<compile_context>
chip_gen: v7x
topology: tpu7x:2x2x1
jax: 0.10.0
libtpu: 0.0.40
codegen_flags: <defaults>
</compile_context>

<pallas_src>
import jax
import jax.numpy as jnp
from jax.experimental import pallas as pl
from jax.experimental.pallas import tpu as pltpu

LANE = 128  # l3 weight is zero-padded to a full 128-lane MXU tile


def _round_up(x, m):
    return ((x + m - 1) // m) * m


def _cdiv(a, b):
    return -(-a // b)


def atma_kernel(x_ref, wb_ref, bb_ref, w1_ref, b1_ref, w2_ref, b2_ref,
                w3_ref, b3_ref, o_ref):
    """Fused backbone(flatten+Linear+ReLU) + l1 + l2 + l3.

    x_ref  : (tile_b, K)        f32 flattened input tile (cast to bf16 here)
    w*_ref : (fan_in, fan_out)  bf16 weights (w3 zero-padded to 128 out columns)
    b*_ref : (1, fan_out)       f32 biases  (b3 is the (1, 1) scalar bias)
    o_ref  : (tile_b, 1)        f32 output column
    """
    # In-kernel f32 -> bf16 cast: no separate XLA cast pass over x in HBM.
    x = x_ref[...].astype(jnp.bfloat16)

    # backbone: Linear + ReLU  (bf16 MXU, f32 accumulate; epilogue in f32)
    h = jnp.dot(x, wb_ref[...], preferred_element_type=jnp.float32) + bb_ref[...]
    h = jnp.maximum(h, 0.0)

    # l1: Linear + ReLU
    h = jnp.dot(h.astype(jnp.bfloat16), w1_ref[...],
                preferred_element_type=jnp.float32) + b1_ref[...]
    h = jnp.maximum(h, 0.0)

    # l2: Linear + ReLU
    h = jnp.dot(h.astype(jnp.bfloat16), w2_ref[...],
                preferred_element_type=jnp.float32) + b2_ref[...]
    h = jnp.maximum(h, 0.0)

    # l3: 128-lane-padded weight (same MXU pass count as out_dim=1); only lane 0
    # is real. Store just that column -> 4 B/row of output HBM traffic.
    y = jnp.dot(h.astype(jnp.bfloat16), w3_ref[...],
                preferred_element_type=jnp.float32)
    o_ref[...] = y[:, 0:1] + b3_ref[...]


def atma_forward(x_nchw, params, tile_cap=512):
    """Runs the fused Pallas kernel. Returns shape (B,), like x.view(x.size(0))."""
    B = x_nchw.shape[0]
    x_flat = x_nchw.reshape(B, -1)          # contiguous view; keep native f32
    K = x_flat.shape[1]

    wb, bb, w1, b1, w2, b2, w3p, b3 = params

    # Tile selection: choose the number of grid steps first, then the smallest
    # 8-aligned tile that covers B in that many steps (minimal batch over-pad).
    #  * >= 2 steps once B >= 16 so both v7x TensorCores get work.
    #  * tile capped at `tile_cap` rows to amortize per-step overhead while
    #    keeping the double-buffered f32 x tile + weights well under 32 MiB.
    #  * tiny batches use a single full-array block (no padding, no OOB rows).
    if B >= 16:
        n_tiles = max(2, _cdiv(B, tile_cap))
        tile_b = _round_up(_cdiv(B, n_tiles), 8)
    else:
        n_tiles, tile_b = 1, B
    b_pad = n_tiles * tile_b                # output rows; never pads x itself

    in_feat = wb.shape[1]
    hid = w1.shape[1]
    flops = 2 * b_pad * (K * in_feat + in_feat * hid + hid * hid + hid * LANE)
    bytes_accessed = (
        int(x_flat.size) * x_flat.dtype.itemsize
        + sum(int(a.size) * a.dtype.itemsize for a in params)
        + b_pad * 4)

    const = lambda i: (0, 0)  # weights/biases resident in VMEM across steps

    out = pl.pallas_call(
        atma_kernel,
        out_shape=jax.ShapeDtypeStruct((b_pad, 1), jnp.float32),
        grid=(n_tiles,),
        in_specs=[
            pl.BlockSpec((tile_b, K), lambda i: (i, 0)),   # x tile (pipelined)
            pl.BlockSpec(wb.shape, const),                 # backbone W (bf16)
            pl.BlockSpec(bb.shape, const),                 # backbone b (f32)
            pl.BlockSpec(w1.shape, const),                 # l1 W
            pl.BlockSpec(b1.shape, const),                 # l1 b
            pl.BlockSpec(w2.shape, const),                 # l2 W
            pl.BlockSpec(b2.shape, const),                 # l2 b
            pl.BlockSpec(w3p.shape, const),                # l3 W (padded to 128)
            pl.BlockSpec(b3.shape, const),                 # l3 b (1, 1)
        ],
        out_specs=pl.BlockSpec((tile_b, 1), lambda i: (i, 0)),
        compiler_params=pltpu.CompilerParams(
            dimension_semantics=("parallel",),
            vmem_limit_bytes=32 << 20,
        ),
        cost_estimate=pl.CostEstimate(
            flops=flops, transcendentals=0, bytes_accessed=bytes_accessed),
    )(x_flat, wb, bb, w1, b1, w2, b2, w3p, b3)

    # Contiguous trim to the real batch (out rows beyond B are ignored).
    return out[:B, 0]


def init_params(key, backbone_in, in_features=384, hidden_dim=384, out_dim=1):
    """PyTorch-style init U(-1/sqrt(fan_in), 1/sqrt(fan_in)); weights stored
    (fan_in, fan_out) in bf16, biases (1, fan_out) in f32; l3 weight is
    zero-padded to 128 lanes, its bias kept as a (1, 1) scalar."""
    def linear(k, fan_in, fan_out):
        kw, kb = jax.random.split(k)
        bound = 1.0 / jnp.sqrt(fan_in)
        w = jax.random.uniform(kw, (fan_in, fan_out), jnp.float32, -bound, bound)
        b = jax.random.uniform(kb, (1, fan_out), jnp.float32, -bound, bound)
        return w, b

    k0, k1, k2, k3 = jax.random.split(key, 4)
    wb, bb = linear(k0, backbone_in, in_features)   # synthetic backbone
    w1, b1 = linear(k1, in_features, hidden_dim)    # l1
    w2, b2 = linear(k2, hidden_dim, hidden_dim)     # l2
    w3, b3 = linear(k3, hidden_dim, out_dim)        # l3

    # Lane padding of the final weight only (bias stays a (1, 1) scalar).
    w3p = jnp.zeros((hidden_dim, LANE), jnp.float32).at[:, :out_dim].set(w3)
    b3s = b3[:, :1]

    to_bf16 = lambda w: w.astype(jnp.bfloat16)  # halve HBM bytes / VMEM footprint
    return (to_bf16(wb), bb, to_bf16(w1), b1, to_bf16(w2), b2,
            to_bf16(w3p), b3s)


if __name__ == "__main__":
    key = jax.random.PRNGKey(0)
    kx, kp = jax.random.split(key)

    # Small NCHW input consistent with an image-backbone model.
    B, C, H, W = 2, 4, 16, 16
    x = jax.random.normal(kx, (B, C, H, W), jnp.float32)

    params = init_params(kp, backbone_in=C * H * W,
                         in_features=384, hidden_dim=384, out_dim=1)

    y = atma_forward(x, params)
    y = jax.block_until_ready(y)
    assert y.shape == (B,), y.shape

    # Pure-JAX reference with the same bf16 rounding of inputs/weights
    # (f32 math) so the check tests the kernel, not the precision choice.
    def ref(x_nchw, params):
        wb, bb, w1, b1, w2, b2, w3p, b3 = params
        h = x_nchw.reshape(x_nchw.shape[0], -1)
        h = h.astype(jnp.bfloat16).astype(jnp.float32)
        h = jnp.maximum(h @ wb.astype(jnp.float32) + bb, 0.0)
        h = jnp.maximum(h @ w1.astype(jnp.float32) + b1, 0.0)
        h = jnp.maximum(h @ w2.astype(jnp.float32) + b2, 0.0)
        return (h @ w3p.astype(jnp.float32))[:, 0] + b3[0, 0]

    y_ref = ref(x, params)
    # bf16 intermediate activations on the MXU path -> loosened tolerance.
    assert jnp.allclose(y, y_ref, atol=3e-2, rtol=3e-2), (y, y_ref)

    print("KERNEL_OK")
</pallas_src>

<mosaic_0001>
module attributes {stable_mosaic.version = 11 : i64} {
  func.func @atma_kernel(%arg0: i32, %arg1: memref<2x1024xf32, #tpu.memory_space<vmem>>, %arg2: memref<1024x384xbf16, #tpu.memory_space<vmem>>, %arg3: memref<1x384xf32, #tpu.memory_space<vmem>>, %arg4: memref<384x384xbf16, #tpu.memory_space<vmem>>, %arg5: memref<1x384xf32, #tpu.memory_space<vmem>>, %arg6: memref<384x384xbf16, #tpu.memory_space<vmem>>, %arg7: memref<1x384xf32, #tpu.memory_space<vmem>>, %arg8: memref<384x128xbf16, #tpu.memory_space<vmem>>, %arg9: memref<1x1xf32, #tpu.memory_space<vmem>>, %arg10: memref<2x1xf32, #tpu.memory_space<vmem>>) attributes {dimension_semantics = [#tpu.dimension_semantics<parallel>], iteration_bounds = array<i64: 1>, scalar_prefetch = 0 : i64, scratch_operands = 0 : i64, tpu.core_type = #tpu.core_type<tc>, window_params = [{transform_indices = @transform_0, window_bounds = array<i64: 2, 1024>}, {pipeline_mode = #tpu.pipeline_mode<synchronous>, transform_indices = @transform_1, window_bounds = array<i64: 1024, 384>}, {pipeline_mode = #tpu.pipeline_mode<synchronous>, transform_indices = @transform_2, window_bounds = array<i64: 1, 384>}, {pipeline_mode = #tpu.pipeline_mode<synchronous>, transform_indices = @transform_3, window_bounds = array<i64: 384, 384>}, {pipeline_mode = #tpu.pipeline_mode<synchronous>, transform_indices = @transform_4, window_bounds = array<i64: 1, 384>}, {pipeline_mode = #tpu.pipeline_mode<synchronous>, transform_indices = @transform_5, window_bounds = array<i64: 384, 384>}, {pipeline_mode = #tpu.pipeline_mode<synchronous>, transform_indices = @transform_6, window_bounds = array<i64: 1, 384>}, {pipeline_mode = #tpu.pipeline_mode<synchronous>, transform_indices = @transform_7, window_bounds = array<i64: 384, 128>}, {pipeline_mode = #tpu.pipeline_mode<synchronous>, transform_indices = @transform_8, window_bounds = array<i64: 1, 1>}, {transform_indices = @transform_9, window_bounds = array<i64: 2, 1>}]} {
    %c0 = arith.constant 0 : index
    %c0_0 = arith.constant 0 : index
    %0 = vector.load %arg1[%c0, %c0_0] : memref<2x1024xf32, #tpu.memory_space<vmem>>, vector<2x1024xf32>
    %1 = arith.truncf %0 : vector<2x1024xf32> to vector<2x1024xbf16>
    %c0_1 = arith.constant 0 : index
    %c0_2 = arith.constant 0 : index
    %2 = vector.load %arg2[%c0_1, %c0_2] : memref<1024x384xbf16, #tpu.memory_space<vmem>>, vector<1024x384xbf16>
    %cst = arith.constant dense<0.000000e+00> : vector<2x384xf32>
    %3 = tpu.matmul %1, %2, %cst {dimension_numbers = #tpu.dot_dimension_numbers<[1], [0], [0], [1], [0, 0, 1, 1], [], []>} : vector<2x1024xbf16>, vector<1024x384xbf16>, vector<2x384xf32> -> vector<2x384xf32>
    %c0_3 = arith.constant 0 : index
    %c0_4 = arith.constant 0 : index
    %4 = vector.load %arg3[%c0_3, %c0_4] : memref<1x384xf32, #tpu.memory_space<vmem>>, vector<1x384xf32>
    %5 = vector.broadcast %4 : vector<1x384xf32> to vector<2x384xf32>
    %6 = arith.addf %3, %5 : vector<2x384xf32>
    %cst_5 = arith.constant 0.000000e+00 : f32
    %7 = vector.broadcast %cst_5 : f32 to vector<2x384xf32>
    %8 = arith.maximumf %6, %7 : vector<2x384xf32>
    %9 = arith.truncf %8 : vector<2x384xf32> to vector<2x384xbf16>
    %c0_6 = arith.constant 0 : index
    %c0_7 = arith.constant 0 : index
    %10 = vector.load %arg4[%c0_6, %c0_7] : memref<384x384xbf16, #tpu.memory_space<vmem>>, vector<384x384xbf16>
    %cst_8 = arith.constant dense<0.000000e+00> : vector<2x384xf32>
    %11 = tpu.matmul %9, %10, %cst_8 {dimension_numbers = #tpu.dot_dimension_numbers<[1], [0], [0], [1], [0, 0, 1, 1], [], []>} : vector<2x384xbf16>, vector<384x384xbf16>, vector<2x384xf32> -> vector<2x384xf32>
    %c0_9 = arith.constant 0 : index
    %c0_10 = arith.constant 0 : index
    %12 = vector.load %arg5[%c0_9, %c0_10] : memref<1x384xf32, #tpu.memory_space<vmem>>, vector<1x384xf32>
    %13 = vector.broadcast %12 : vector<1x384xf32> to vector<2x384xf32>
    %14 = arith.addf %11, %13 : vector<2x384xf32>
    %cst_11 = arith.constant 0.000000e+00 : f32
    %15 = vector.broadcast %cst_11 : f32 to vector<2x384xf32>
    %16 = arith.maximumf %14, %15 : vector<2x384xf32>
    %17 = arith.truncf %16 : vector<2x384xf32> to vector<2x384xbf16>
    %c0_12 = arith.constant 0 : index
    %c0_13 = arith.constant 0 : index
    %18 = vector.load %arg6[%c0_12, %c0_13] : memref<384x384xbf16, #tpu.memory_space<vmem>>, vector<384x384xbf16>
    %cst_14 = arith.constant dense<0.000000e+00> : vector<2x384xf32>
    %19 = tpu.matmul %17, %18, %cst_14 {dimension_numbers = #tpu.dot_dimension_numbers<[1], [0], [0], [1], [0, 0, 1, 1], [], []>} : vector<2x384xbf16>, vector<384x384xbf16>, vector<2x384xf32> -> vector<2x384xf32>
    %c0_15 = arith.constant 0 : index
    %c0_16 = arith.constant 0 : index
    %20 = vector.load %arg7[%c0_15, %c0_16] : memref<1x384xf32, #tpu.memory_space<vmem>>, vector<1x384xf32>
    %21 = vector.broadcast %20 : vector<1x384xf32> to vector<2x384xf32>
    %22 = arith.addf %19, %21 : vector<2x384xf32>
    %cst_17 = arith.constant 0.000000e+00 : f32
    %23 = vector.broadcast %cst_17 : f32 to vector<2x384xf32>
    %24 = arith.maximumf %22, %23 : vector<2x384xf32>
    %25 = arith.truncf %24 : vector<2x384xf32> to vector<2x384xbf16>
    %c0_18 = arith.constant 0 : index
    %c0_19 = arith.constant 0 : index
    %26 = vector.load %arg8[%c0_18, %c0_19] : memref<384x128xbf16, #tpu.memory_space<vmem>>, vector<384x128xbf16>
    %cst_20 = arith.constant dense<0.000000e+00> : vector<2x128xf32>
    %27 = tpu.matmul %25, %26, %cst_20 {dimension_numbers = #tpu.dot_dimension_numbers<[1], [0], [0], [1], [0, 0, 1, 1], [], []>} : vector<2x384xbf16>, vector<384x128xbf16>, vector<2x128xf32> -> vector<2x128xf32>
    %28 = vector.extract_strided_slice %27 {offsets = [0, 0], sizes = [2, 1], strides = [1, 1]} : vector<2x128xf32> to vector<2x1xf32>
    %c0_21 = arith.constant 0 : index
    %c0_22 = arith.constant 0 : index
    %29 = vector.load %arg9[%c0_21, %c0_22] : memref<1x1xf32, #tpu.memory_space<vmem>>, vector<1x1xf32>
    %30 = vector.broadcast %29 : vector<1x1xf32> to vector<2x1xf32>
    %31 = arith.addf %28, %30 : vector<2x1xf32>
    %c0_23 = arith.constant 0 : index
    %c0_24 = arith.constant 0 : index
    %32 = vector.load %arg10[%c0_23, %c0_24] : memref<2x1xf32, #tpu.memory_space<vmem>>, vector<2x1xf32>
    tpu.vector_store %arg10[%c0_23, %c0_24], %31 {strides = array<i32>} : memref<2x1xf32, #tpu.memory_space<vmem>>, vector<2x1xf32>,
    return
  }
  func.func @transform_0(%arg0: i32) -> (i32, i32) {
    %c0_i32 = arith.constant 0 : i32
    %c0_i32_0 = arith.constant 0 : i32
    return %arg0, %c0_i32 : i32, i32
  }
  func.func @transform_1(%arg0: i32) -> (i32, i32) {
    %c0_i32 = arith.constant 0 : i32
    %c0_i32_0 = arith.constant 0 : i32
    %c0_i32_1 = arith.constant 0 : i32
    return %c0_i32, %c0_i32_0 : i32, i32
  }
  func.func @transform_2(%arg0: i32) -> (i32, i32) {
    %c0_i32 = arith.constant 0 : i32
    %c0_i32_0 = arith.constant 0 : i32
    %c0_i32_1 = arith.constant 0 : i32
    return %c0_i32, %c0_i32_0 : i32, i32
  }
  func.func @transform_3(%arg0: i32) -> (i32, i32) {
    %c0_i32 = arith.constant 0 : i32
    %c0_i32_0 = arith.constant 0 : i32
    %c0_i32_1 = arith.constant 0 : i32
    return %c0_i32, %c0_i32_0 : i32, i32
  }
  func.func @transform_4(%arg0: i32) -> (i32, i32) {
    %c0_i32 = arith.constant 0 : i32
    %c0_i32_0 = arith.constant 0 : i32
    %c0_i32_1 = arith.constant 0 : i32
    return %c0_i32, %c0_i32_0 : i32, i32
  }
  func.func @transform_5(%arg0: i32) -> (i32, i32) {
    %c0_i32 = arith.constant 0 : i32
    %c0_i32_0 = arith.constant 0 : i32
    %c0_i32_1 = arith.constant 0 : i32
    return %c0_i32, %c0_i32_0 : i32, i32
  }
  func.func @transform_6(%arg0: i32) -> (i32, i32) {
    %c0_i32 = arith.constant 0 : i32
    %c0_i32_0 = arith.constant 0 : i32
    %c0_i32_1 = arith.constant 0 : i32
    return %c0_i32, %c0_i32_0 : i32, i32
  }
  func.func @transform_7(%arg0: i32) -> (i32, i32) {
    %c0_i32 = arith.constant 0 : i32
    %c0_i32_0 = arith.constant 0 : i32
    %c0_i32_1 = arith.constant 0 : i32
    return %c0_i32, %c0_i32_0 : i32, i32
  }
  func.func @transform_8(%arg0: i32) -> (i32, i32) {
    %c0_i32 = arith.constant 0 : i32
    %c0_i32_0 = arith.constant 0 : i32
    %c0_i32_1 = arith.constant 0 : i32
    return %c0_i32, %c0_i32_0 : i32, i32
  }
  func.func @transform_9(%arg0: i32) -> (i32, i32) {
    %c0_i32 = arith.constant 0 : i32
    %c0_i32_0 = arith.constant 0 : i32
    return %arg0, %c0_i32 : i32, i32
  }
}

</mosaic_0001>

<llo_original>
// kernel: tpu_custom_call.1
$region0: #{tpu_custom_call.1}
  #allocation0 [shape = 'u32[]', space=smem, size = 0x4, offset = 0x4, fixed_abs, tag = 'smem constant byte address 0x4 - core index']
  #allocation1 [shape = 'u32[144,128]{1,0:T(1,128)}', space=vmem, size = 0x12000, scoped, tag = 'internal scratch']
  #allocation2 [shape = 'f32[1,1]{1,0:T(1,128)S(1)}', space=vmem, size = 0x200, scoped, tag = 'scoped memory for tpu_custom_call.1']
  %s0 = inlined_call_operand.hbm [shape: f32[2,1024], index: 0, kind: input, shape index: {}]
  %s1 = inlined_call_operand.hbm [shape: bf16[1024,384], index: 1, kind: input, shape index: {}]
  %s2 = inlined_call_operand.vmem [shape: f32[1,384], index: 2, kind: input, shape index: {}]
  %s3 = inlined_call_operand.hbm [shape: bf16[384,384], index: 3, kind: input, shape index: {}]
  %s4 = inlined_call_operand.vmem [shape: f32[1,384], index: 4, kind: input, shape index: {}]
  %s5 = inlined_call_operand.hbm [shape: bf16[384,384], index: 5, kind: input, shape index: {}]
  %s6 = inlined_call_operand.vmem [shape: f32[1,384], index: 6, kind: input, shape index: {}]
  %s7 = inlined_call_operand.hbm [shape: bf16[384,128], index: 7, kind: input, shape index: {}]
  %s8 = inlined_call_operand.<no memory space> [shape: f32[1,1], index: 8, kind: input, shape index: {}]
  %s9 = inlined_call_operand.vmem [shape: f32[2,1], index: 9, kind: output, shape index: {}]
  %s10 = sld [smem:[#allocation0]]
  $region66: #{tpu_custom_call.1} parent=0
    _
  %s12 = ssub.s32 1, %s10
  %s13 = scalar_select 0, %s12, %s10
  %v14 = vstv %s8
  %15 = vst [vmem:[#allocation2] sm:$0x1] %v14
  $region1: #{tpu_custom_call.1} parent=0
    #allocation3 [shape = 'u8[8192]{0}', space=vmem, size = 0x2000, scoped, tag = 'input window, operand 0, single buffered']
    #allocation4 [shape = 's32[1]{0}', space=sflag, size = 0x4, scoped, tag = 'scoped memory for tpu_custom_call.1']
    #allocation5 [shape = 'u8[786432]{0}', space=vmem, size = 0xc0000, scoped, tag = 'input window, operand 1, single buffered']
    #allocation6 [shape = 's32[1]{0}', space=sflag, size = 0x4, scoped, tag = 'scoped memory for tpu_custom_call.1']
    #allocation7 [shape = 'u8[294912]{0}', space=vmem, size = 0x48000, scoped, tag = 'input window, operand 3, single buffered']
    #allocation8 [shape = 'u8[294912]{0}', space=vmem, size = 0x48000, scoped, tag = 'input window, operand 5, single buffered']
    #allocation9 [shape = 's32[1]{0}', space=sflag, size = 0x4, scoped, tag = 'scoped memory for tpu_custom_call.1']
    #allocation10 [shape = 'u8[98304]{0}', space=vmem, size = 0x18000, scoped, tag = 'input window, operand 7, single buffered']
    %16 = vsyncpa [#allocation4], 0
    %17 = vsyncpa [#allocation6], 0
    %18 = vsyncpa [#allocation9], 0
    // Predicated region
    $region2: #{tpu_custom_call.1} parent=1 // pred_check
      _
    $region3: #{tpu_custom_call.1} parent=1 // pred_check_branch
      %20 = sbr.rel (0) target = $region5
    $region4: #{tpu_custom_call.1} parent=1 // pred_region
      %s22 = ssub.s32 256, 256
      %23 = vsyncadd [#allocation4], %s22
      %s25 = sshll.u32 [#allocation3], 4
      %s26 = int_to_ptr.vmem [resolvable:$true] %s25
      %28 = dma.hbm_to_vmem [thread:$0]  %s0, 256, %s26, [#allocation4]
    $region5: #{tpu_custom_call.1} parent=1 // pred_fallthru
      _
    // Predicated region
    $region6: #{tpu_custom_call.1} parent=1 // pred_check
      _
    $region7: #{tpu_custom_call.1} parent=1 // pred_check_branch
      %30 = sbr.rel (0) target = $region9
    $region8: #{tpu_custom_call.1} parent=1 // pred_region
      %s32 = ssub.s32 24576, 24576
      %33 = vsyncadd [#allocation6], %s32
      %s34 = sshll.u32 [#allocation5], 4
      %s35 = int_to_ptr.vmem [resolvable:$true] %s34
      %40 = dma.hbm_to_vmem [thread:$0]  %s1, 24576, %s35, [#allocation6], 192, 192, 12
    $region9: #{tpu_custom_call.1} parent=1 // pred_fallthru
      _
    // Predicated region
    $region10: #{tpu_custom_call.1} parent=1 // pred_check
      _
    $region11: #{tpu_custom_call.1} parent=1 // pred_check_branch
      %42 = sbr.rel (0) target = $region13
    $region12: #{tpu_custom_call.1} parent=1 // pred_region
      _
    $region13: #{tpu_custom_call.1} parent=1 // pred_fallthru
      _
    // Predicated region
    $region14: #{tpu_custom_call.1} parent=1 // pred_check
      _
    $region15: #{tpu_custom_call.1} parent=1 // pred_check_branch
      %44 = sbr.rel (0) target = $region17
    $region16: #{tpu_custom_call.1} parent=1 // pred_region
      %s46 = ssub.s32 9216, 9216
      %47 = vsyncadd [#allocation6], %s46
      %s48 = sshll.u32 [#allocation7], 4
      %s49 = int_to_ptr.vmem [resolvable:$true] %s48
      %54 = dma.hbm_to_vmem [thread:$0]  %s3, 9216, %s49, [#allocation6], 192, 192, 12
    $region17: #{tpu_custom_call.1} parent=1 // pred_fallthru
      _
    // Predicated region
    $region18: #{tpu_custom_call.1} parent=1 // pred_check
      _
    $region19: #{tpu_custom_call.1} parent=1 // pred_check_branch
      %56 = sbr.rel (0) target = $region21
    $region20: #{tpu_custom_call.1} parent=1 // pred_region
      _
    $region21: #{tpu_custom_call.1} parent=1 // pred_fallthru
      _
    // Predicated region
    $region22: #{tpu_custom_call.1} parent=1 // pred_check
      _
    $region23: #{tpu_custom_call.1} parent=1 // pred_check_branch
      %58 = sbr.rel (0) target = $region25
    $region24: #{tpu_custom_call.1} parent=1 // pred_region
      %s60 = ssub.s32 9216, 9216
      %61 = vsyncadd [#allocation9], %s60
      %s62 = sshll.u32 [#allocation8], 4
      %s63 = int_to_ptr.vmem [resolvable:$true] %s62
      %68 = dma.hbm_to_vmem [thread:$0]  %s5, 9216, %s63, [#allocation9], 192, 192, 12
    $region25: #{tpu_custom_call.1} parent=1 // pred_fallthru
      _
    // Predicated region
    $region26: #{tpu_custom_call.1} parent=1 // pred_check
      _
    $region27: #{tpu_custom_call.1} parent=1 // pred_check_branch
      %70 = sbr.rel (0) target = $region29
    $region28: #{tpu_custom_call.1} parent=1 // pred_region
      _
    $region29: #{tpu_custom_call.1} parent=1 // pred_fallthru
      _
    // Predicated region
    $region30: #{tpu_custom_call.1} parent=1 // pred_check
      _
    $region31: #{tpu_custom_call.1} parent=1 // pred_check_branch
      %72 = sbr.rel (0) target = $region33
    $region32: #{tpu_custom_call.1} parent=1 // pred_region
      %s74 = ssub.s32 3072, 3072
      %75 = vsyncadd [#allocation9], %s74
      %s76 = sshll.u32 [#allocation10], 4
      %s77 = int_to_ptr.vmem [resolvable:$true] %s76
      %82 = dma.hbm_to_vmem [thread:$0]  %s7, 3072, %s77, [#allocation9], 64, 64, 4
    $region33: #{tpu_custom_call.1} parent=1 // pred_fallthru
      _
    // Predicated region
    $region34: #{tpu_custom_call.1} parent=1 // pred_check
      _
    $region35: #{tpu_custom_call.1} parent=1 // pred_check_branch
      %84 = sbr.rel (0) target = $region37
    $region36: #{tpu_custom_call.1} parent=1 // pred_region
      _
    $region37: #{tpu_custom_call.1} parent=1 // pred_fallthru
      _
    // Predicated region
    $region38: #{tpu_custom_call.1} parent=1 // pred_check
      _
    $region39: #{tpu_custom_call.1} parent=1 // pred_check_branch
      %86 = sbr.rel (0) target = $region41
    $region40: #{tpu_custom_call.1} parent=1 // pred_region
      %87 = dma.done [#allocation4], 256
    $region41: #{tpu_custom_call.1} parent=1 // pred_fallthru
      _
    // Predicated region
    $region42: #{tpu_custom_call.1} parent=1 // pred_check
      _
    $region43: #{tpu_custom_call.1} parent=1 // pred_check_branch
      %89 = sbr.rel (0) target = $region45
    $region44: #{tpu_custom_call.1} parent=1 // pred_region
      %90 = dma.done [#allocation6], 24576
    $region45: #{tpu_custom_call.1} parent=1 // pred_fallthru
      _
    // Predicated region
    $region46: #{tpu_custom_call.1} parent=1 // pred_check
      _
    $region47: #{tpu_custom_call.1} parent=1 // pred_check_branch
      %92 = sbr.rel (0) target = $region49
    $region48: #{tpu_custom_call.1} parent=1 // pred_region
      %93 = dma.done [#allocation6], 9216
    $region49: #{tpu_custom_call.1} parent=1 // pred_fallthru
      _
    // Predicated region
    $region50: #{tpu_custom_call.1} parent=1 // pred_check
      _
    $region51: #{tpu_custom_call.1} parent=1 // pred_check_branch
      %95 = sbr.rel (0) target = $region53
    $region52: #{tpu_custom_call.1} parent=1 // pred_region
      %96 = dma.done [#allocation9], 9216
    $region53: #{tpu_custom_call.1} parent=1 // pred_fallthru
      _
    // Predicated region
    $region54: #{tpu_custom_call.1} parent=1 // pred_check
      _
    $region55: #{tpu_custom_call.1} parent=1 // pred_check_branch
      %98 = sbr.rel (0) target = $region57
    $region56: #{tpu_custom_call.1} parent=1 // pred_region
      %99 = dma.done [#allocation9], 3072
    $region57: #{tpu_custom_call.1} parent=1 // pred_fallthru
      _
    %v101 = vld [vmem:[#allocation3] sm:$0xff]
    %v102 = vld [vmem:[#allocation3 + $0x8] sm:$0xff]
    %v105 = vcombine.high %v101, %v101
    %v107 = vunpack.c.l.s4 1983009808
    %v108 = vunpack.c.0.s8 %v107
    %v109 = vlaneseq
    %v110 = vshrl.u32 %v109, 7
    %v111 = vsub.s32 %v108, %v110
    %v112 = vrot.slane %v101, %v111
    %v114 = vunpack.c.l.s4 1983009808
    %v115 = vunpack.c.0.s8 %v114
    %v116 = vlaneseq
    %v117 = vshrl.u32 %v116, 7
    %v118 = vsub.s32 %v115, %v117
    %v119 = vrot.slane %v105, %v118
    %v120 = vcombine.high %v112, %v112
    %v121 = vcombine.high %v119, %v119
    %v122 = vcombine.high %v102, %v102
    %v124 = vunpack.c.l.s4 1983009808
    %v125 = vunpack.c.0.s8 %v124
    %v126 = vlaneseq
    %v127 = vshrl.u32 %v126, 7
    %v128 = vsub.s32 %v125, %v127
    %v129 = vrot.slane %v102, %v128
    %v131 = vunpack.c.l.s4 1983009808
    %v132 = vunpack.c.0.s8 %v131
    %v133 = vlaneseq
    %v134 = vshrl.u32 %v133, 7
    %v135 = vsub.s32 %v132, %v134
    %v136 = vrot.slane %v122, %v135
    %v137 = vcombine.high %v129, %v129
    %v138 = vcombine.high %v136, %v136
    %v147 = vpack.c.bf16 %v112, %v112
    %v148 = vpack.c.bf16 %v120, %v120
    %v149 = vpack.c.bf16 %v119, %v119
    %v150 = vpack.c.bf16 %v121, %v121
    %v151 = vpack.c.bf16 %v129, %v129
    %v152 = vpack.c.bf16 %v137, %v137
    %v153 = vpack.c.bf16 %v136, %v136
    %v154 = vpack.c.bf16 %v138, %v138
    %v155 = vld [vmem:[#allocation5] sm:$0xff]
    %v156 = vld [vmem:[#allocation5 + $0x8] sm:$0xf]
    %v157 = vld [vmem:[#allocation5 + $0xc] sm:$0xff]
    %v158 = vld [vmem:[#allocation5 + $0x14] sm:$0xf]
    %v159 = vld [vmem:[#allocation5 + $0x18] sm:$0xff]
    %v160 = vld [vmem:[#allocation5 + $0x20] sm:$0xf]
    %v161 = vld [vmem:[#allocation5 + $0x24] sm:$0xff]
    %v162 = vld [vmem:[#allocation5 + $0x2c] sm:$0xf]
    %v163 = vld [vmem:[#allocation5 + $0x30] sm:$0xff]
    %v164 = vld [vmem:[#allocation5 + $0x38] sm:$0xf]
    %v165 = vld [vmem:[#allocation5 + $0x3c] sm:$0xff]
    %v166 = vld [vmem:[#allocation5 + $0x44] sm:$0xf]
    %v167 = vld [vmem:[#allocation5 + $0x48] sm:$0xff]
    %v168 = vld [vmem:[#allocation5 + $0x50] sm:$0xf]
    %v169 = vld [vmem:[#allocation5 + $0x54] sm:$0xff]
    %v170 = vld [vmem:[#allocation5 + $0x5c] sm:$0xf]
    %v171 = vld [vmem:[#allocation5 + $0x60] sm:$0xff]
    %v172 = vld [vmem:[#allocation5 + $0x68] sm:$0xf]
    %v173 = vld [vmem:[#allocation5 + $0x6c] sm:$0xff]
    %v174 = vld [vmem:[#allocation5 + $0x74] sm:$0xf]
    %v175 = vld [vmem:[#allocation5 + $0x78] sm:$0xff]
    %v176 = vld [vmem:[#allocation5 + $0x80] sm:$0xf]
    %v177 = vld [vmem:[#allocation5 + $0x84] sm:$0xff]
    %v178 = vld [vmem:[#allocation5 + $0x8c] sm:$0xf]
    %v179 = vld [vmem:[#allocation5 + $0x90] sm:$0xff]
    %v180 = vld [vmem:[#allocation5 + $0x98] sm:$0xf]
    %v181 = vld [vmem:[#allocation5 + $0x9c] sm:$0xff]
    %v182 = vld [vmem:[#allocation5 + $0xa4] sm:$0xf]
    %v183 = vld [vmem:[#allocation5 + $0xa8] sm:$0xff]
    %v184 = vld [vmem:[#allocation5 + $0xb0] sm:$0xf]
    %v185 = vld [vmem:[#allocation5 + $0xb4] sm:$0xff]
    %v186 = vld [vmem:[#allocation5 + $0xbc] sm:$0xf]
    %v187 = vld [vmem:[#allocation5 + $0xc0] sm:$0xff]
    %v188 = vld [vmem:[#allocation5 + $0xc8] sm:$0xf]
    %v189 = vld [vmem:[#allocation5 + $0xcc] sm:$0xff]
    %v190 = vld [vmem:[#allocation5 + $0xd4] sm:$0xf]
    %v191 = vld [vmem:[#allocation5 + $0xd8] sm:$0xff]
    %v192 = vld [vmem:[#allocation5 + $0xe0] sm:$0xf]
    %v193 = vld [vmem:[#allocation5 + $0xe4] sm:$0xff]
    %v194 = vld [vmem:[#allocation5 + $0xec] sm:$0xf]
    %v195 = vld [vmem:[#allocation5 + $0xf0] sm:$0xff]
    %v196 = vld [vmem:[#allocation5 + $0xf8] sm:$0xf]
    %v197 = vld [vmem:[#allocation5 + $0xfc] sm:$0xff]
    %v198 = vld [vmem:[#allocation5 + $0x104] sm:$0xf]
    %v199 = vld [vmem:[#allocation5 + $0x108] sm:$0xff]
    %v200 = vld [vmem:[#allocation5 + $0x110] sm:$0xf]
    %v201 = vld [vmem:[#allocation5 + $0x114] sm:$0xff]
    %v202 = vld [vmem:[#allocation5 + $0x11c] sm:$0xf]
    %v203 = vld [vmem:[#allocation5 + $0x120] sm:$0xff]
    %v204 = vld [vmem:[#allocation5 + $0x128] sm:$0xf]
    %v205 = vld [vmem:[#allocation5 + $0x12c] sm:$0xff]
    %v206 = vld [vmem:[#allocation5 + $0x134] sm:$0xf]
    %v207 = vld [vmem:[#allocation5 + $0x138] sm:$0xff]
    %v208 = vld [vmem:[#allocation5 + $0x140] sm:$0xf]
    %v209 = vld [vmem:[#allocation5 + $0x144] sm:$0xff]
    %v210 = vld [vmem:[#allocation5 + $0x14c] sm:$0xf]
    %v211 = vld [vmem:[#allocation5 + $0x150] sm:$0xff]
    %v212 = vld [vmem:[#allocation5 + $0x158] sm:$0xf]
    %v213 = vld [vmem:[#allocation5 + $0x15c] sm:$0xff]
    %v214 = vld [vmem:[#allocation5 + $0x164] sm:$0xf]
    %v215 = vld [vmem:[#allocation5 + $0x168] sm:$0xff]
    %v216 = vld [vmem:[#allocation5 + $0x170] sm:$0xf]
    %v217 = vld [vmem:[#allocation5 + $0x174] sm:$0xff]
    %v218 = vld [vmem:[#allocation5 + $0x17c] sm:$0xf]
    %v219 = vld [vmem:[#allocation5 + $0x180] sm:$0xff]
    %v220 = vld [vmem:[#allocation5 + $0x188] sm:$0xf]
    %v221 = vld [vmem:[#allocation5 + $0x18c] sm:$0xff]
    %v222 = vld [vmem:[#allocation5 + $0x194] sm:$0xf]
    %v223 = vld [vmem:[#allocation5 + $0x198] sm:$0xff]
    %v224 = vld [vmem:[#allocation5 + $0x1a0] sm:$0xf]
    %v225 = vld [vmem:[#allocation5 + $0x1a4] sm:$0xff]
    %v226 = vld [vmem:[#allocation5 + $0x1ac] sm:$0xf]
    %v227 = vld [vmem:[#allocation5 + $0x1b0] sm:$0xff]
    %v228 = vld [vmem:[#allocation5 + $0x1b8] sm:$0xf]
    %v229 = vld [vmem:[#allocation5 + $0x1bc] sm:$0xff]
    %v230 = vld [vmem:[#allocation5 + $0x1c4] sm:$0xf]
    %v231 = vld [vmem:[#allocation5 + $0x1c8] sm:$0xff]
    %v232 = vld [vmem:[#allocation5 + $0x1d0] sm:$0xf]
    %v233 = vld [vmem:[#allocation5 + $0x1d4] sm:$0xff]
    %v234 = vld [vmem:[#allocation5 + $0x1dc] sm:$0xf]
    %v235 = vld [vmem:[#allocation5 + $0x1e0] sm:$0xff]
    %v236 = vld [vmem:[#allocation5 + $0x1e8] sm:$0xf]
    %v237 = vld [vmem:[#allocation5 + $0x1ec] sm:$0xff]
    %v238 = vld [vmem:[#allocation5 + $0x1f4] sm:$0xf]
    %v239 = vld [vmem:[#allocation5 + $0x1f8] sm:$0xff]
    %v240 = vld [vmem:[#allocation5 + $0x200] sm:$0xf]
    %v241 = vld [vmem:[#allocation5 + $0x204] sm:$0xff]
    %v242 = vld [vmem:[#allocation5 + $0x20c] sm:$0xf]
    %v243 = vld [vmem:[#allocation5 + $0x210] sm:$0xff]
    %v244 = vld [vmem:[#allocation5 + $0x218] sm:$0xf]
    %v245 = vld [vmem:[#allocation5 + $0x21c] sm:$0xff]
    %v246 = vld [vmem:[#allocation5 + $0x224] sm:$0xf]
    %v247 = vld [vmem:[#allocation5 + $0x228] sm:$0xff]
    %v248 = vld [vmem:[#allocation5 + $0x230] sm:$0xf]
    %v249 = vld [vmem:[#allocation5 + $0x234] sm:$0xff]
    %v250 = vld [vmem:[#allocation5 + $0x23c] sm:$0xf]
    %v251 = vld [vmem:[#allocation5 + $0x240] sm:$0xff]
    %v252 = vld [vmem:[#allocation5 + $0x248] sm:$0xf]
    %v253 = vld [vmem:[#allocation5 + $0x24c] sm:$0xff]
    %v254 = vld [vmem:[#allocation5 + $0x254] sm:$0xf]
    %v255 = vld [vmem:[#allocation5 + $0x258] sm:$0xff]
    %v256 = vld [vmem:[#allocation5 + $0x260] sm:$0xf]
    %v257 = vld [vmem:[#allocation5 + $0x264] sm:$0xff]
    %v258 = vld [vmem:[#allocation5 + $0x26c] sm:$0xf]
    %v259 = vld [vmem:[#allocation5 + $0x270] sm:$0xff]
    %v260 = vld [vmem:[#allocation5 + $0x278] sm:$0xf]
    %v261 = vld [vmem:[#allocation5 + $0x27c] sm:$0xff]
    %v262 = vld [vmem:[#allocation5 + $0x284] sm:$0xf]
    %v263 = vld [vmem:[#allocation5 + $0x288] sm:$0xff]
    %v264 = vld [vmem:[#allocation5 + $0x290] sm:$0xf]
    %v265 = vld [vmem:[#allocation5 + $0x294] sm:$0xff]
    %v266 = vld [vmem:[#allocation5 + $0x29c] sm:$0xf]
    %v267 = vld [vmem:[#allocation5 + $0x2a0] sm:$0xff]
    %v268 = vld [vmem:[#allocation5 + $0x2a8] sm:$0xf]
    %v269 = vld [vmem:[#allocation5 + $0x2ac] sm:$0xff]
    %v270 = vld [vmem:[#allocation5 + $0x2b4] sm:$0xf]
    %v271 = vld [vmem:[#allocation5 + $0x2b8] sm:$0xff]
    %v272 = vld [vmem:[#allocation5 + $0x2c0] sm:$0xf]
    %v273 = vld [vmem:[#allocation5 + $0x2c4] sm:$0xff]
    %v274 = vld [vmem:[#allocation5 + $0x2cc] sm:$0xf]
    %v275 = vld [vmem:[#allocation5 + $0x2d0] sm:$0xff]
    %v276 = vld [vmem:[#allocation5 + $0x2d8] sm:$0xf]
    %v277 = vld [vmem:[#allocation5 + $0x2dc] sm:$0xff]
    %v278 = vld [vmem:[#allocation5 + $0x2e4] sm:$0xf]
    %v279 = vld [vmem:[#allocation5 + $0x2e8] sm:$0xff]
    %v280 = vld [vmem:[#allocation5 + $0x2f0] sm:$0xf]
    %v281 = vld [vmem:[#allocation5 + $0x2f4] sm:$0xff]
    %v282 = vld [vmem:[#allocation5 + $0x2fc] sm:$0xf]
    %v283 = vld [vmem:[#allocation5 + $0x300] sm:$0xff]
    %v284 = vld [vmem:[#allocation5 + $0x308] sm:$0xf]
    %v285 = vld [vmem:[#allocation5 + $0x30c] sm:$0xff]
    %v286 = vld [vmem:[#allocation5 + $0x314] sm:$0xf]
    %v287 = vld [vmem:[#allocation5 + $0x318] sm:$0xff]
    %v288 = vld [vmem:[#allocation5 + $0x320] sm:$0xf]
    %v289 = vld [vmem:[#allocation5 + $0x324] sm:$0xff]
    %v290 = vld [vmem:[#allocation5 + $0x32c] sm:$0xf]
    %v291 = vld [vmem:[#allocation5 + $0x330] sm:$0xff]
    %v292 = vld [vmem:[#allocation5 + $0x338] sm:$0xf]
    %v293 = vld [vmem:[#allocation5 + $0x33c] sm:$0xff]
    %v294 = vld [vmem:[#allocation5 + $0x344] sm:$0xf]
    %v295 = vld [vmem:[#allocation5 + $0x348] sm:$0xff]
    %v296 = vld [vmem:[#allocation5 + $0x350] sm:$0xf]
    %v297 = vld [vmem:[#allocation5 + $0x354] sm:$0xff]
    %v298 = vld [vmem:[#allocation5 + $0x35c] sm:$0xf]
    %v299 = vld [vmem:[#allocation5 + $0x360] sm:$0xff]
    %v300 = vld [vmem:[#allocation5 + $0x368] sm:$0xf]
    %v301 = vld [vmem:[#allocation5 + $0x36c] sm:$0xff]
    %v302 = vld [vmem:[#allocation5 + $0x374] sm:$0xf]
    %v303 = vld [vmem:[#allocation5 + $0x378] sm:$0xff]
    %v304 = vld [vmem:[#allocation5 + $0x380] sm:$0xf]
    %v305 = vld [vmem:[#allocation5 + $0x384] sm:$0xff]
    %v306 = vld [vmem:[#allocation5 + $0x38c] sm:$0xf]
    %v307 = vld [vmem:[#allocation5 + $0x390] sm:$0xff]
    %v308 = vld [vmem:[#allocation5 + $0x398] sm:$0xf]
    %v309 = vld [vmem:[#allocation5 + $0x39c] sm:$0xff]
    %v310 = vld [vmem:[#allocation5 + $0x3a4] sm:$0xf]
    %v311 = vld [vmem:[#allocation5 + $0x3a8] sm:$0xff]
    %v312 = vld [vmem:[#allocation5 + $0x3b0] sm:$0xf]
    %v313 = vld [vmem:[#allocation5 + $0x3b4] sm:$0xff]
    %v314 = vld [vmem:[#allocation5 + $0x3bc] sm:$0xf]
    %v315 = vld [vmem:[#allocation5 + $0x3c0] sm:$0xff]
    %v316 = vld [vmem:[#allocation5 + $0x3c8] sm:$0xf]
    %v317 = vld [vmem:[#allocation5 + $0x3cc] sm:$0xff]
    %v318 = vld [vmem:[#allocation5 + $0x3d4] sm:$0xf]
    %v319 = vld [vmem:[#allocation5 + $0x3d8] sm:$0xff]
    %v320 = vld [vmem:[#allocation5 + $0x3e0] sm:$0xf]
    %v321 = vld [vmem:[#allocation5 + $0x3e4] sm:$0xff]
    %v322 = vld [vmem:[#allocation5 + $0x3ec] sm:$0xf]
    %v323 = vld [vmem:[#allocation5 + $0x3f0] sm:$0xff]
    %v324 = vld [vmem:[#allocation5 + $0x3f8] sm:$0xf]
    %v325 = vld [vmem:[#allocation5 + $0x3fc] sm:$0xff]
    %v326 = vld [vmem:[#allocation5 + $0x404] sm:$0xf]
    %v327 = vld [vmem:[#allocation5 + $0x408] sm:$0xff]
    %v328 = vld [vmem:[#allocation5 + $0x410] sm:$0xf]
    %v329 = vld [vmem:[#allocation5 + $0x414] sm:$0xff]
    %v330 = vld [vmem:[#allocation5 + $0x41c] sm:$0xf]
    %v331 = vld [vmem:[#allocation5 + $0x420] sm:$0xff]
    %v332 = vld [vmem:[#allocation5 + $0x428] sm:$0xf]
    %v333 = vld [vmem:[#allocation5 + $0x42c] sm:$0xff]
    %v334 = vld [vmem:[#allocation5 + $0x434] sm:$0xf]
    %v335 = vld [vmem:[#allocation5 + $0x438] sm:$0xff]
    %v336 = vld [vmem:[#allocation5 + $0x440] sm:$0xf]
    %v337 = vld [vmem:[#allocation5 + $0x444] sm:$0xff]
    %v338 = vld [vmem:[#allocation5 + $0x44c] sm:$0xf]
    %v339 = vld [vmem:[#allocation5 + $0x450] sm:$0xff]
    %v340 = vld [vmem:[#allocation5 + $0x458] sm:$0xf]
    %v341 = vld [vmem:[#allocation5 + $0x45c] sm:$0xff]
    %v342 = vld [vmem:[#allocation5 + $0x464] sm:$0xf]
    %v343 = vld [vmem:[#allocation5 + $0x468] sm:$0xff]
    %v344 = vld [vmem:[#allocation5 + $0x470] sm:$0xf]
    %v345 = vld [vmem:[#allocation5 + $0x474] sm:$0xff]
    %v346 = vld [vmem:[#allocation5 + $0x47c] sm:$0xf]
    %v347 = vld [vmem:[#allocation5 + $0x480] sm:$0xff]
    %v348 = vld [vmem:[#allocation5 + $0x488] sm:$0xf]
    %v349 = vld [vmem:[#allocation5 + $0x48c] sm:$0xff]
    %v350 = vld [vmem:[#allocation5 + $0x494] sm:$0xf]
    %v351 = vld [vmem:[#allocation5 + $0x498] sm:$0xff]
    %v352 = vld [vmem:[#allocation5 + $0x4a0] sm:$0xf]
    %v353 = vld [vmem:[#allocation5 + $0x4a4] sm:$0xff]
    %v354 = vld [vmem:[#allocation5 + $0x4ac] sm:$0xf]
    %v355 = vld [vmem:[#allocation5 + $0x4b0] sm:$0xff]
    %v356 = vld [vmem:[#allocation5 + $0x4b8] sm:$0xf]
    %v357 = vld [vmem:[#allocation5 + $0x4bc] sm:$0xff]
    %v358 = vld [vmem:[#allocation5 + $0x4c4] sm:$0xf]
    %v359 = vld [vmem:[#allocation5 + $0x4c8] sm:$0xff]
    %v360 = vld [vmem:[#allocation5 + $0x4d0] sm:$0xf]
    %v361 = vld [vmem:[#allocation5 + $0x4d4] sm:$0xff]
    %v362 = vld [vmem:[#allocation5 + $0x4dc] sm:$0xf]
    %v363 = vld [vmem:[#allocation5 + $0x4e0] sm:$0xff]
    %v364 = vld [vmem:[#allocation5 + $0x4e8] sm:$0xf]
    %v365 = vld [vmem:[#allocation5 + $0x4ec] sm:$0xff]
    %v366 = vld [vmem:[#allocation5 + $0x4f4] sm:$0xf]
    %v367 = vld [vmem:[#allocation5 + $0x4f8] sm:$0xff]
    %v368 = vld [vmem:[#allocation5 + $0x500] sm:$0xf]
    %v369 = vld [vmem:[#allocation5 + $0x504] sm:$0xff]
    %v370 = vld [vmem:[#allocation5 + $0x50c] sm:$0xf]
    %v371 = vld [vmem:[#allocation5 + $0x510] sm:$0xff]
    %v372 = vld [vmem:[#allocation5 + $0x518] sm:$0xf]
    %v373 = vld [vmem:[#allocation5 + $0x51c] sm:$0xff]
    %v374 = vld [vmem:[#allocation5 + $0x524] sm:$0xf]
    %v375 = vld [vmem:[#allocation5 + $0x528] sm:$0xff]
    %v376 = vld [vmem:[#allocation5 + $0x530] sm:$0xf]
    %v377 = vld [vmem:[#allocation5 + $0x534] sm:$0xff]
    %v378 = vld [vmem:[#allocation5 + $0x53c] sm:$0xf]
    %v379 = vld [vmem:[#allocation5 + $0x540] sm:$0xff]
    %v380 = vld [vmem:[#allocation5 + $0x548] sm:$0xf]
    %v381 = vld [vmem:[#allocation5 + $0x54c] sm:$0xff]
    %v382 = vld [vmem:[#allocation5 + $0x554] sm:$0xf]
    %v383 = vld [vmem:[#allocation5 + $0x558] sm:$0xff]
    %v384 = vld [vmem:[#allocation5 + $0x560] sm:$0xf]
    %v385 = vld [vmem:[#allocation5 + $0x564] sm:$0xff]
    %v386 = vld [vmem:[#allocation5 + $0x56c] sm:$0xf]
    %v387 = vld [vmem:[#allocation5 + $0x570] sm:$0xff]
    %v388 = vld [vmem:[#allocation5 + $0x578] sm:$0xf]
    %v389 = vld [vmem:[#allocation5 + $0x57c] sm:$0xff]
    %v390 = vld [vmem:[#allocation5 + $0x584] sm:$0xf]
    %v391 = vld [vmem:[#allocation5 + $0x588] sm:$0xff]
    %v392 = vld [vmem:[#allocation5 + $0x590] sm:$0xf]
    %v393 = vld [vmem:[#allocation5 + $0x594] sm:$0xff]
    %v394 = vld [vmem:[#allocation5 + $0x59c] sm:$0xf]
    %v395 = vld [vmem:[#allocation5 + $0x5a0] sm:$0xff]
    %v396 = vld [vmem:[#allocation5 + $0x5a8] sm:$0xf]
    %v397 = vld [vmem:[#allocation5 + $0x5ac] sm:$0xff]
    %v398 = vld [vmem:[#allocation5 + $0x5b4] sm:$0xf]
    %v399 = vld [vmem:[#allocation5 + $0x5b8] sm:$0xff]
    %v400 = vld [vmem:[#allocation5 + $0x5c0] sm:$0xf]
    %v401 = vld [vmem:[#allocation5 + $0x5c4] sm:$0xff]
    %v402 = vld [vmem:[#allocation5 + $0x5cc] sm:$0xf]
    %v403 = vld [vmem:[#allocation5 + $0x5d0] sm:$0xff]
    %v404 = vld [vmem:[#allocation5 + $0x5d8] sm:$0xf]
    %v405 = vld [vmem:[#allocation5 + $0x5dc] sm:$0xff]
    %v406 = vld [vmem:[#allocation5 + $0x5e4] sm:$0xf]
    %v407 = vld [vmem:[#allocation5 + $0x5e8] sm:$0xff]
    %v408 = vld [vmem:[#allocation5 + $0x5f0] sm:$0xf]
    %v409 = vld [vmem:[#allocation5 + $0x5f4] sm:$0xff]
    %v410 = vld [vmem:[#allocation5 + $0x5fc] sm:$0xf]
    %v411 = vld [vmem:[%s2] sm:$0x7]
    %v413 = vlaneseq
    %v414 = vshrl.u32 %v413, 7
    %v415 = vsub.s32 0, %v414
    %v416 = vrot.slane %v411, %v415
    %v417 = vlaneseq
    %v418 = vshrl.u32 %v417, 7
    %v419 = vsub.s32 1, %v418
    %v420 = vrot.slane %v411, %v419
    %v421 = vlaneseq
    %v422 = vshrl.u32 %v421, 7
    %v423 = vsub.s32 2, %v422
    %v424 = vrot.slane %v411, %v423
    %v684 = vunpack.c.l.b16 %v155
    %v685 = vunpack.c.h.b16 %v155
    %v686 = vunpack.c.l.b16 %v156
    %v687 = vunpack.c.l.b16 %v157
    %v688 = vunpack.c.h.b16 %v157
    %v689 = vunpack.c.l.b16 %v158
    %v690 = vunpack.c.l.b16 %v159
    %v691 = vunpack.c.h.b16 %v159
    %v692 = vunpack.c.l.b16 %v160
    %v693 = vunpack.c.l.b16 %v161
    %v694 = vunpack.c.h.b16 %v161
    %v695 = vunpack.c.l.b16 %v162
    %v696 = vunpack.c.l.b16 %v163
    %v697 = vunpack.c.h.b16 %v163
    %v698 = vunpack.c.l.b16 %v164
    %v699 = vunpack.c.l.b16 %v165
    %v700 = vunpack.c.h.b16 %v165
    %v701 = vunpack.c.l.b16 %v166
    %v702 = vunpack.c.l.b16 %v167
    %v703 = vunpack.c.h.b16 %v167
    %v704 = vunpack.c.l.b16 %v168
    %v705 = vunpack.c.l.b16 %v169
    %v706 = vunpack.c.h.b16 %v169
    %v707 = vunpack.c.l.b16 %v170
    %v708 = vunpack.c.l.b16 %v171
    %v709 = vunpack.c.h.b16 %v171
    %v710 = vunpack.c.l.b16 %v172
    %v711 = vunpack.c.l.b16 %v173
    %v712 = vunpack.c.h.b16 %v173
    %v713 = vunpack.c.l.b16 %v174
    %v714 = vunpack.c.l.b16 %v175
    %v715 = vunpack.c.h.b16 %v175
    %v716 = vunpack.c.l.b16 %v176
    %v717 = vunpack.c.l.b16 %v177
    %v718 = vunpack.c.h.b16 %v177
    %v719 = vunpack.c.l.b16 %v178
    %v720 = vunpack.c.l.b16 %v179
    %v721 = vunpack.c.h.b16 %v179
    %v722 = vunpack.c.l.b16 %v180
    %v723 = vunpack.c.l.b16 %v181
    %v724 = vunpack.c.h.b16 %v181
    %v725 = vunpack.c.l.b16 %v182
    %v726 = vunpack.c.l.b16 %v183
    %v727 = vunpack.c.h.b16 %v183
    %v728 = vunpack.c.l.b16 %v184
    %v729 = vunpack.c.l.b16 %v185
    %v730 = vunpack.c.h.b16 %v185
    %v731 = vunpack.c.l.b16 %v186
    %v732 = vunpack.c.l.b16 %v187
    %v733 = vunpack.c.h.b16 %v187
    %v734 = vunpack.c.l.b16 %v188
    %v735 = vunpack.c.l.b16 %v189
    %v736 = vunpack.c.h.b16 %v189
    %v737 = vunpack.c.l.b16 %v190
    %v738 = vunpack.c.l.b16 %v191
    %v739 = vunpack.c.h.b16 %v191
    %v740 = vunpack.c.l.b16 %v192
    %v741 = vunpack.c.l.b16 %v193
    %v742 = vunpack.c.h.b16 %v193
    %v743 = vunpack.c.l.b16 %v194
    %v744 = vunpack.c.l.b16 %v195
    %v745 = vunpack.c.h.b16 %v195
    %v746 = vunpack.c.l.b16 %v196
    %v747 = vunpack.c.l.b16 %v197
    %v748 = vunpack.c.h.b16 %v197
    %v749 = vunpack.c.l.b16 %v198
    %v750 = vunpack.c.l.b16 %v199
    %v751 = vunpack.c.h.b16 %v199
    %v752 = vunpack.c.l.b16 %v200
    %v753 = vunpack.c.l.b16 %v201
    %v754 = vunpack.c.h.b16 %v201
    %v755 = vunpack.c.l.b16 %v202
    %v756 = vunpack.c.l.b16 %v203
    %v757 = vunpack.c.h.b16 %v203
    %v758 = vunpack.c.l.b16 %v204
    %v759 = vunpack.c.l.b16 %v205
    %v760 = vunpack.c.h.b16 %v205
    %v761 = vunpack.c.l.b16 %v206
    %v762 = vunpack.c.l.b16 %v207
    %v763 = vunpack.c.h.b16 %v207
    %v764 = vunpack.c.l.b16 %v208
    %v765 = vunpack.c.l.b16 %v209
    %v766 = vunpack.c.h.b16 %v209
    %v767 = vunpack.c.l.b16 %v210
    %v768 = vunpack.c.l.b16 %v211
    %v769 = vunpack.c.h.b16 %v211
    %v770 = vunpack.c.l.b16 %v212
    %v771 = vunpack.c.l.b16 %v213
    %v772 = vunpack.c.h.b16 %v213
    %v773 = vunpack.c.l.b16 %v214
    %v774 = vunpack.c.l.b16 %v215
    %v775 = vunpack.c.h.b16 %v215
    %v776 = vunpack.c.l.b16 %v216
    %v777 = vunpack.c.l.b16 %v217
    %v778 = vunpack.c.h.b16 %v217
    %v779 = vunpack.c.l.b16 %v218
    %v780 = vunpack.c.l.b16 %v219
    %v781 = vunpack.c.h.b16 %v219
    %v782 = vunpack.c.l.b16 %v220
    %v783 = vunpack.c.l.b16 %v221
    %v784 = vunpack.c.h.b16 %v221
    %v785 = vunpack.c.l.b16 %v222
    %v786 = vunpack.c.l.b16 %v223
    %v787 = vunpack.c.h.b16 %v223
    %v788 = vunpack.c.l.b16 %v224
    %v789 = vunpack.c.l.b16 %v225
    %v790 = vunpack.c.h.b16 %v225
    %v791 = vunpack.c.l.b16 %v226
    %v792 = vunpack.c.l.b16 %v227
    %v793 = vunpack.c.h.b16 %v227
    %v794 = vunpack.c.l.b16 %v228
    %v795 = vunpack.c.l.b16 %v229
    %v796 = vunpack.c.h.b16 %v229
    %v797 = vunpack.c.l.b16 %v230
    %v798 = vunpack.c.l.b16 %v231
    %v799 = vunpack.c.h.b16 %v231
    %v800 = vunpack.c.l.b16 %v232
    %v801 = vunpack.c.l.b16 %v233
    %v802 = vunpack.c.h.b16 %v233
    %v803 = vunpack.c.l.b16 %v234
    %v804 = vunpack.c.l.b16 %v235
    %v805 = vunpack.c.h.b16 %v235
    %v806 = vunpack.c.l.b16 %v236
    %v807 = vunpack.c.l.b16 %v237
    %v808 = vunpack.c.h.b16 %v237
    %v809 = vunpack.c.l.b16 %v238
    %v810 = vunpack.c.l.b16 %v239
    %v811 = vunpack.c.h.b16 %v239
    %v812 = vunpack.c.l.b16 %v240
    %v813 = vunpack.c.l.b16 %v241
    %v814 = vunpack.c.h.b16 %v241
    %v815 = vunpack.c.l.b16 %v242
    %v816 = vunpack.c.l.b16 %v243
    %v817 = vunpack.c.h.b16 %v243
    %v818 = vunpack.c.l.b16 %v244
    %v819 = vunpack.c.l.b16 %v245
    %v820 = vunpack.c.h.b16 %v245
    %v821 = vunpack.c.l.b16 %v246
    %v822 = vunpack.c.l.b16 %v247
    %v823 = vunpack.c.h.b16 %v247
    %v824 = vunpack.c.l.b16 %v248
    %v825 = vunpack.c.l.b16 %v249
    %v826 = vunpack.c.h.b16 %v249
    %v827 = vunpack.c.l.b16 %v250
    %v828 = vunpack.c.l.b16 %v251
    %v829 = vunpack.c.h.b16 %v251
    %v830 = vunpack.c.l.b16 %v252
    %v831 = vunpack.c.l.b16 %v253
    %v832 = vunpack.c.h.b16 %v253
    %v833 = vunpack.c.l.b16 %v254
    %v834 = vunpack.c.l.b16 %v255
    %v835 = vunpack.c.h.b16 %v255
    %v836 = vunpack.c.l.b16 %v256
    %v837 = vunpack.c.l.b16 %v257
    %v838 = vunpack.c.h.b16 %v257
    %v839 = vunpack.c.l.b16 %v258
    %v840 = vunpack.c.l.b16 %v259
    %v841 = vunpack.c.h.b16 %v259
    %v842 = vunpack.c.l.b16 %v260
    %v843 = vunpack.c.l.b16 %v261
    %v844 = vunpack.c.h.b16 %v261
    %v845 = vunpack.c.l.b16 %v262
    %v846 = vunpack.c.l.b16 %v263
    %v847 = vunpack.c.h.b16 %v263
    %v848 = vunpack.c.l.b16 %v264
    %v849 = vunpack.c.l.b16 %v265
    %v850 = vunpack.c.h.b16 %v265
    %v851 = vunpack.c.l.b16 %v266
    %v852 = vunpack.c.l.b16 %v267
    %v853 = vunpack.c.h.b16 %v267
    %v854 = vunpack.c.l.b16 %v268
    %v855 = vunpack.c.l.b16 %v269
    %v856 = vunpack.c.h.b16 %v269
    %v857 = vunpack.c.l.b16 %v270
    %v858 = vunpack.c.l.b16 %v271
    %v859 = vunpack.c.h.b16 %v271
    %v860 = vunpack.c.l.b16 %v272
    %v861 = vunpack.c.l.b16 %v273
    %v862 = vunpack.c.h.b16 %v273
    %v863 = vunpack.c.l.b16 %v274
    %v864 = vunpack.c.l.b16 %v275
    %v865 = vunpack.c.h.b16 %v275
    %v866 = vunpack.c.l.b16 %v276
    %v867 = vunpack.c.l.b16 %v277
    %v868 = vunpack.c.h.b16 %v277
    %v869 = vunpack.c.l.b16 %v278
    %v870 = vunpack.c.l.b16 %v279
    %v871 = vunpack.c.h.b16 %v279
    %v872 = vunpack.c.l.b16 %v280
    %v873 = vunpack.c.l.b16 %v281
    %v874 = vunpack.c.h.b16 %v281
    %v875 = vunpack.c.l.b16 %v282
    %v876 = vunpack.c.l.b16 %v283
    %v877 = vunpack.c.h.b16 %v283
    %v878 = vunpack.c.l.b16 %v284
    %v879 = vunpack.c.l.b16 %v285
    %v880 = vunpack.c.h.b16 %v285
    %v881 = vunpack.c.l.b16 %v286
    %v882 = vunpack.c.l.b16 %v287
    %v883 = vunpack.c.h.b16 %v287
    %v884 = vunpack.c.l.b16 %v288
    %v885 = vunpack.c.l.b16 %v289
    %v886 = vunpack.c.h.b16 %v289
    %v887 = vunpack.c.l.b16 %v290
    %v888 = vunpack.c.l.b16 %v291
    %v889 = vunpack.c.h.b16 %v291
    %v890 = vunpack.c.l.b16 %v292
    %v891 = vunpack.c.l.b16 %v293
    %v892 = vunpack.c.h.b16 %v293
    %v893 = vunpack.c.l.b16 %v294
    %v894 = vunpack.c.l.b16 %v295
    %v895 = vunpack.c.h.b16 %v295
    %v896 = vunpack.c.l.b16 %v296
    %v897 = vunpack.c.l.b16 %v297
    %v898 = vunpack.c.h.b16 %v297
    %v899 = vunpack.c.l.b16 %v298
    %v900 = vunpack.c.l.b16 %v299
    %v901 = vunpack.c.h.b16 %v299
    %v902 = vunpack.c.l.b16 %v300
    %v903 = vunpack.c.l.b16 %v301
    %v904 = vunpack.c.h.b16 %v301
    %v905 = vunpack.c.l.b16 %v302
    %v906 = vunpack.c.l.b16 %v303
    %v907 = vunpack.c.h.b16 %v303
    %v908 = vunpack.c.l.b16 %v304
    %v909 = vunpack.c.l.b16 %v305
    %v910 = vunpack.c.h.b16 %v305
    %v911 = vunpack.c.l.b16 %v306
    %v912 = vunpack.c.l.b16 %v307
    %v913 = vunpack.c.h.b16 %v307
    %v914 = vunpack.c.l.b16 %v308
    %v915 = vunpack.c.l.b16 %v309
    %v916 = vunpack.c.h.b16 %v309
    %v917 = vunpack.c.l.b16 %v310
    %v918 = vunpack.c.l.b16 %v311
    %v919 = vunpack.c.h.b16 %v311
    %v920 = vunpack.c.l.b16 %v312
    %v921 = vunpack.c.l.b16 %v313
    %v922 = vunpack.c.h.b16 %v313
    %v923 = vunpack.c.l.b16 %v314
    %v924 = vunpack.c.l.b16 %v315
    %v925 = vunpack.c.h.b16 %v315
    %v926 = vunpack.c.l.b16 %v316
    %v927 = vunpack.c.l.b16 %v317
    %v928 = vunpack.c.h.b16 %v317
    %v929 = vunpack.c.l.b16 %v318
    %v930 = vunpack.c.l.b16 %v319
    %v931 = vunpack.c.h.b16 %v319
    %v932 = vunpack.c.l.b16 %v320
    %v933 = vunpack.c.l.b16 %v321
    %v934 = vunpack.c.h.b16 %v321
    %v935 = vunpack.c.l.b16 %v322
    %v936 = vunpack.c.l.b16 %v323
    %v937 = vunpack.c.h.b16 %v323
    %v938 = vunpack.c.l.b16 %v324
    %v939 = vunpack.c.l.b16 %v325
    %v940 = vunpack.c.h.b16 %v325
    %v941 = vunpack.c.l.b16 %v326
    %v942 = vunpack.c.l.b16 %v327
    %v943 = vunpack.c.h.b16 %v327
    %v944 = vunpack.c.l.b16 %v328
    %v945 = vunpack.c.l.b16 %v329
    %v946 = vunpack.c.h.b16 %v329
    %v947 = vunpack.c.l.b16 %v330
    %v948 = vunpack.c.l.b16 %v331
    %v949 = vunpack.c.h.b16 %v331
    %v950 = vunpack.c.l.b16 %v332
    %v951 = vunpack.c.l.b16 %v333
    %v952 = vunpack.c.h.b16 %v333
    %v953 = vunpack.c.l.b16 %v334
    %v954 = vunpack.c.l.b16 %v335
    %v955 = vunpack.c.h.b16 %v335
    %v956 = vunpack.c.l.b16 %v336
    %v957 = vunpack.c.l.b16 %v337
    %v958 = vunpack.c.h.b16 %v337
    %v959 = vunpack.c.l.b16 %v338
    %v960 = vunpack.c.l.b16 %v339
    %v961 = vunpack.c.h.b16 %v339
    %v962 = vunpack.c.l.b16 %v340
    %v963 = vunpack.c.l.b16 %v341
    %v964 = vunpack.c.h.b16 %v341
    %v965 = vunpack.c.l.b16 %v342
    %v966 = vunpack.c.l.b16 %v343
    %v967 = vunpack.c.h.b16 %v343
    %v968 = vunpack.c.l.b16 %v344
    %v969 = vunpack.c.l.b16 %v345
    %v970 = vunpack.c.h.b16 %v345
    %v971 = vunpack.c.l.b16 %v346
    %v972 = vunpack.c.l.b16 %v347
    %v973 = vunpack.c.h.b16 %v347
    %v974 = vunpack.c.l.b16 %v348
    %v975 = vunpack.c.l.b16 %v349
    %v976 = vunpack.c.h.b16 %v349
    %v977 = vunpack.c.l.b16 %v350
    %v978 = vunpack.c.l.b16 %v351
    %v979 = vunpack.c.h.b16 %v351
    %v980 = vunpack.c.l.b16 %v352
    %v981 = vunpack.c.l.b16 %v353
    %v982 = vunpack.c.h.b16 %v353
    %v983 = vunpack.c.l.b16 %v354
    %v984 = vunpack.c.l.b16 %v355
    %v985 = vunpack.c.h.b16 %v355
    %v986 = vunpack.c.l.b16 %v356
    %v987 = vunpack.c.l.b16 %v357
    %v988 = vunpack.c.h.b16 %v357
    %v989 = vunpack.c.l.b16 %v358
    %v990 = vunpack.c.l.b16 %v359
    %v991 = vunpack.c.h.b16 %v359
    %v992 = vunpack.c.l.b16 %v360
    %v993 = vunpack.c.l.b16 %v361
    %v994 = vunpack.c.h.b16 %v361
    %v995 = vunpack.c.l.b16 %v362
    %v996 = vunpack.c.l.b16 %v363
    %v997 = vunpack.c.h.b16 %v363
    %v998 = vunpack.c.l.b16 %v364
    %v999 = vunpack.c.l.b16 %v365
    %v1000 = vunpack.c.h.b16 %v365
    %v1001 = vunpack.c.l.b16 %v366
    %v1002 = vunpack.c.l.b16 %v367
    %v1003 = vunpack.c.h.b16 %v367
    %v1004 = vunpack.c.l.b16 %v368
    %v1005 = vunpack.c.l.b16 %v369
    %v1006 = vunpack.c.h.b16 %v369
    %v1007 = vunpack.c.l.b16 %v370
    %v1008 = vunpack.c.l.b16 %v371
    %v1009 = vunpack.c.h.b16 %v371
    %v1010 = vunpack.c.l.b16 %v372
    %v1011 = vunpack.c.l.b16 %v373
    %v1012 = vunpack.c.h.b16 %v373
    %v1013 = vunpack.c.l.b16 %v374
    %v1014 = vunpack.c.l.b16 %v375
    %v1015 = vunpack.c.h.b16 %v375
    %v1016 = vunpack.c.l.b16 %v376
    %v1017 = vunpack.c.l.b16 %v377
    %v1018 = vunpack.c.h.b16 %v377
    %v1019 = vunpack.c.l.b16 %v378
    %v1020 = vunpack.c.l.b16 %v379
    %v1021 = vunpack.c.h.b16 %v379
    %v1022 = vunpack.c.l.b16 %v380
    %v1023 = vunpack.c.l.b16 %v381
    %v1024 = vunpack.c.h.b16 %v381
    %v1025 = vunpack.c.l.b16 %v382
    %v1026 = vunpack.c.l.b16 %v383
    %v1027 = vunpack.c.h.b16 %v383
    %v1028 = vunpack.c.l.b16 %v384
    %v1029 = vunpack.c.l.b16 %v385
    %v1030 = vunpack.c.h.b16 %v385
    %v1031 = vunpack.c.l.b16 %v386
    %v1032 = vunpack.c.l.b16 %v387
    %v1033 = vunpack.c.h.b16 %v387
    %v1034 = vunpack.c.l.b16 %v388
    %v1035 = vunpack.c.l.b16 %v389
    %v1036 = vunpack.c.h.b16 %v389
    %v1037 = vunpack.c.l.b16 %v390
    %v1038 = vunpack.c.l.b16 %v391
    %v1039 = vunpack.c.h.b16 %v391
    %v1040 = vunpack.c.l.b16 %v392
    %v1041 = vunpack.c.l.b16 %v393
    %v1042 = vunpack.c.h.b16 %v393
    %v1043 = vunpack.c.l.b16 %v394
    %v1044 = vunpack.c.l.b16 %v395
    %v1045 = vunpack.c.h.b16 %v395
    %v1046 = vunpack.c.l.b16 %v396
    %v1047 = vunpack.c.l.b16 %v397
    %v1048 = vunpack.c.h.b16 %v397
    %v1049 = vunpack.c.l.b16 %v398
    %v1050 = vunpack.c.l.b16 %v399
    %v1051 = vunpack.c.h.b16 %v399
    %v1052 = vunpack.c.l.b16 %v400
    %v1053 = vunpack.c.l.b16 %v401
    %v1054 = vunpack.c.h.b16 %v401
    %v1055 = vunpack.c.l.b16 %v402
    %v1056 = vunpack.c.l.b16 %v403
    %v1057 = vunpack.c.h.b16 %v403
    %v1058 = vunpack.c.l.b16 %v404
    %v1059 = vunpack.c.l.b16 %v405
    %v1060 = vunpack.c.h.b16 %v405
    %v1061 = vunpack.c.l.b16 %v406
    %v1062 = vunpack.c.l.b16 %v407
    %v1063 = vunpack.c.h.b16 %v407
    %v1064 = vunpack.c.l.b16 %v408
    %v1065 = vunpack.c.l.b16 %v409
    %v1066 = vunpack.c.h.b16 %v409
    %v1067 = vunpack.c.l.b16 %v410
    %v1068 = vpack.c.b16 %v687, %v684
    %v1069 = vpack.c.b16 %v688, %v685
    %v1070 = vpack.c.b16 %v689, %v686
    %v1071 = vpack.c.b16 %v693, %v690
    %v1072 = vpack.c.b16 %v694, %v691
    %v1073 = vpack.c.b16 %v695, %v692
    %v1074 = vpack.c.b16 %v699, %v696
    %v1075 = vpack.c.b16 %v700, %v697
    %v1076 = vpack.c.b16 %v701, %v698
    %v1077 = vpack.c.b16 %v705, %v702
    %v1078 = vpack.c.b16 %v706, %v703
    %v1079 = vpack.c.b16 %v707, %v704
    %v1080 = vpack.c.b16 %v711, %v708
    %v1081 = vpack.c.b16 %v712, %v709
    %v1082 = vpack.c.b16 %v713, %v710
    %v1083 = vpack.c.b16 %v717, %v714
    %v1084 = vpack.c.b16 %v718, %v715
    %v1085 = vpack.c.b16 %v719, %v716
    %v1086 = vpack.c.b16 %v723, %v720
    %v1087 = vpack.c.b16 %v724, %v721
    %v1088 = vpack.c.b16 %v725, %v722
    %v1089 = vpack.c.b16 %v729, %v726
    %v1090 = vpack.c.b16 %v730, %v727
    %v1091 = vpack.c.b16 %v731, %v728
    %v1092 = vpack.c.b16 %v735, %v732
    %v1093 = vpack.c.b16 %v736, %v733
    %v1094 = vpack.c.b16 %v737, %v734
    %v1095 = vpack.c.b16 %v741, %v738
    %v1096 = vpack.c.b16 %v742, %v739
    %v1097 = vpack.c.b16 %v743, %v740
    %v1098 = vpack.c.b16 %v747, %v744
    %v1099 = vpack.c.b16 %v748, %v745
    %v1100 = vpack.c.b16 %v749, %v746
    %v1101 = vpack.c.b16 %v753, %v750
    %v1102 = vpack.c.b16 %v754, %v751
    %v1103 = vpack.c.b16 %v755, %v752
    %v1104 = vpack.c.b16 %v759, %v756
    %v1105 = vpack.c.b16 %v760, %v757
    %v1106 = vpack.c.b16 %v761, %v758
    %v1107 = vpack.c.b16 %v765, %v762
    %v1108 = vpack.c.b16 %v766, %v763
    %v1109 = vpack.c.b16 %v767, %v764
    %v1110 = vpack.c.b16 %v771, %v768
    %v1111 = vpack.c.b16 %v772, %v769
    %v1112 = vpack.c.b16 %v773, %v770
    %v1113 = vpack.c.b16 %v777, %v774
    %v1114 = vpack.c.b16 %v778, %v775
    %v1115 = vpack.c.b16 %v779, %v776
    %v1116 = vpack.c.b16 %v783, %v780
    %v1117 = vpack.c.b16 %v784, %v781
    %v1118 = vpack.c.b16 %v785, %v782
    %v1119 = vpack.c.b16 %v789, %v786
    %v1120 = vpack.c.b16 %v790, %v787
    %v1121 = vpack.c.b16 %v791, %v788
    %v1122 = vpack.c.b16 %v795, %v792
    %v1123 = vpack.c.b16 %v796, %v793
    %v1124 = vpack.c.b16 %v797, %v794
    %v1125 = vpack.c.b16 %v801, %v798
    %v1126 = vpack.c.b16 %v802, %v799
    %v1127 = vpack.c.b16 %v803, %v800
    %v1128 = vpack.c.b16 %v807, %v804
    %v1129 = vpack.c.b16 %v808, %v805
    %v1130 = vpack.c.b16 %v809, %v806
    %v1131 = vpack.c.b16 %v813, %v810
    %v1132 = vpack.c.b16 %v814, %v811
    %v1133 = vpack.c.b16 %v815, %v812
    %v1134 = vpack.c.b16 %v819, %v816
    %v1135 = vpack.c.b16 %v820, %v817
    %v1136 = vpack.c.b16 %v821, %v818
    %v1137 = vpack.c.b16 %v825, %v822
    %v1138 = vpack.c.b16 %v826, %v823
    %v1139 = vpack.c.b16 %v827, %v824
    %v1140 = vpack.c.b16 %v831, %v828
    %v1141 = vpack.c.b16 %v832, %v829
    %v1142 = vpack.c.b16 %v833, %v830
    %v1143 = vpack.c.b16 %v837, %v834
    %v1144 = vpack.c.b16 %v838, %v835
    %v1145 = vpack.c.b16 %v839, %v836
    %v1146 = vpack.c.b16 %v843, %v840
    %v1147 = vpack.c.b16 %v844, %v841
    %v1148 = vpack.c.b16 %v845, %v842
    %v1149 = vpack.c.b16 %v849, %v846
    %v1150 = vpack.c.b16 %v850, %v847
    %v1151 = vpack.c.b16 %v851, %v848
    %v1152 = vpack.c.b16 %v855, %v852
    %v1153 = vpack.c.b16 %v856, %v853
    %v1154 = vpack.c.b16 %v857, %v854
    %v1155 = vpack.c.b16 %v861, %v858
    %v1156 = vpack.c.b16 %v862, %v859
    %v1157 = vpack.c.b16 %v863, %v860
    %v1158 = vpack.c.b16 %v867, %v864
    %v1159 = vpack.c.b16 %v868, %v865
    %v1160 = vpack.c.b16 %v869, %v866
    %v1161 = vpack.c.b16 %v873, %v870
    %v1162 = vpack.c.b16 %v874, %v871
    %v1163 = vpack.c.b16 %v875, %v872
    %v1164 = vpack.c.b16 %v879, %v876
    %v1165 = vpack.c.b16 %v880, %v877
    %v1166 = vpack.c.b16 %v881, %v878
    %v1167 = vpack.c.b16 %v885, %v882
    %v1168 = vpack.c.b16 %v886, %v883
    %v1169 = vpack.c.b16 %v887, %v884
    %v1170 = vpack.c.b16 %v891, %v888
    %v1171 = vpack.c.b16 %v892, %v889
    %v1172 = vpack.c.b16 %v893, %v890
    %v1173 = vpack.c.b16 %v897, %v894
    %v1174 = vpack.c.b16 %v898, %v895
    %v1175 = vpack.c.b16 %v899, %v896
    %v1176 = vpack.c.b16 %v903, %v900
    %v1177 = vpack.c.b16 %v904, %v901
    %v1178 = vpack.c.b16 %v905, %v902
    %v1179 = vpack.c.b16 %v909, %v906
    %v1180 = vpack.c.b16 %v910, %v907
    %v1181 = vpack.c.b16 %v911, %v908
    %v1182 = vpack.c.b16 %v915, %v912
    %v1183 = vpack.c.b16 %v916, %v913
    %v1184 = vpack.c.b16 %v917, %v914
    %v1185 = vpack.c.b16 %v921, %v918
    %v1186 = vpack.c.b16 %v922, %v919
    %v1187 = vpack.c.b16 %v923, %v920
    %v1188 = vpack.c.b16 %v927, %v924
    %v1189 = vpack.c.b16 %v928, %v925
    %v1190 = vpack.c.b16 %v929, %v926
    %v1191 = vpack.c.b16 %v933, %v930
    %v1192 = vpack.c.b16 %v934, %v931
    %v1193 = vpack.c.b16 %v935, %v932
    %v1194 = vpack.c.b16 %v939, %v936
    %v1195 = vpack.c.b16 %v940, %v937
    %v1196 = vpack.c.b16 %v941, %v938
    %v1197 = vpack.c.b16 %v945, %v942
    %v1198 = vpack.c.b16 %v946, %v943
    %v1199 = vpack.c.b16 %v947, %v944
    %v1200 = vpack.c.b16 %v951, %v948
    %v1201 = vpack.c.b16 %v952, %v949
    %v1202 = vpack.c.b16 %v953, %v950
    %v1203 = vpack.c.b16 %v957, %v954
    %v1204 = vpack.c.b16 %v958, %v955
    %v1205 = vpack.c.b16 %v959, %v956
    %v1206 = vpack.c.b16 %v963, %v960
    %v1207 = vpack.c.b16 %v964, %v961
    %v1208 = vpack.c.b16 %v965, %v962
    %v1209 = vpack.c.b16 %v969, %v966
    %v1210 = vpack.c.b16 %v970, %v967
    %v1211 = vpack.c.b16 %v971, %v968
    %v1212 = vpack.c.b16 %v975, %v972
    %v1213 = vpack.c.b16 %v976, %v973
    %v1214 = vpack.c.b16 %v977, %v974
    %v1215 = vpack.c.b16 %v981, %v978
    %v1216 = vpack.c.b16 %v982, %v979
    %v1217 = vpack.c.b16 %v983, %v980
    %v1218 = vpack.c.b16 %v987, %v984
    %v1219 = vpack.c.b16 %v988, %v985
    %v1220 = vpack.c.b16 %v989, %v986
    %v1221 = vpack.c.b16 %v993, %v990
    %v1222 = vpack.c.b16 %v994, %v991
    %v1223 = vpack.c.b16 %v995, %v992
    %v1224 = vpack.c.b16 %v999, %v996
    %v1225 = vpack.c.b16 %v1000, %v997
    %v1226 = vpack.c.b16 %v1001, %v998
    %v1227 = vpack.c.b16 %v1005, %v1002
    %v1228 = vpack.c.b16 %v1006, %v1003
    %v1229 = vpack.c.b16 %v1007, %v1004
    %v1230 = vpack.c.b16 %v1011, %v1008
    %v1231 = vpack.c.b16 %v1012, %v1009
    %v1232 = vpack.c.b16 %v1013, %v1010
    %v1233 = vpack.c.b16 %v1017, %v1014
    %v1234 = vpack.c.b16 %v1018, %v1015
    %v1235 = vpack.c.b16 %v1019, %v1016
    %v1236 = vpack.c.b16 %v1023, %v1020
    %v1237 = vpack.c.b16 %v1024, %v1021
    %v1238 = vpack.c.b16 %v1025, %v1022
    %v1239 = vpack.c.b16 %v1029, %v1026
    %v1240 = vpack.c.b16 %v1030, %v1027
    %v1241 = vpack.c.b16 %v1031, %v1028
    %v1242 = vpack.c.b16 %v1035, %v1032
    %v1243 = vpack.c.b16 %v1036, %v1033
    %v1244 = vpack.c.b16 %v1037, %v1034
    %v1245 = vpack.c.b16 %v1041, %v1038
    %v1246 = vpack.c.b16 %v1042, %v1039
    %v1247 = vpack.c.b16 %v1043, %v1040
    %v1248 = vpack.c.b16 %v1047, %v1044
    %v1249 = vpack.c.b16 %v1048, %v1045
    %v1250 = vpack.c.b16 %v1049, %v1046
    %v1251 = vpack.c.b16 %v1053, %v1050
    %v1252 = vpack.c.b16 %v1054, %v1051
    %v1253 = vpack.c.b16 %v1055, %v1052
    %v1254 = vpack.c.b16 %v1059, %v1056
    %v1255 = vpack.c.b16 %v1060, %v1057
    %v1256 = vpack.c.b16 %v1061, %v1058
    %v1257 = vpack.c.b16 %v1065, %v1062
    %v1258 = vpack.c.b16 %v1066, %v1063
    %v1259 = vpack.c.b16 %v1067, %v1064
    %1452 = vmatprep.subr.bf16.mxu0 %v1069
    %1453 = vmatpush1.bf16.msra.mxu0 %v1068
    %1454 = vmatprep.subr.bf16.mxu0 %v1072
    %1455 = vmatpush1.bf16.msra.mxu0 %v1071
    %1456 = vmatprep.subr.bf16.mxu0 %v1075
    %1457 = vmatpush1.bf16.msra.mxu0 %v1074
    %1458 = vmatprep.subr.bf16.mxu0 %v1078
    %1459 = vmatpush1.bf16.msra.mxu0 %v1077
    %1460 = vmatprep.subr.bf16.mxu0 %v1081
    %1461 = vmatpush1.bf16.msra.mxu0 %v1080
    %1462 = vmatprep.subr.bf16.mxu0 %v1084
    %1463 = vmatpush1.bf16.msra.mxu0 %v1083
    %1464 = vmatprep.subr.bf16.mxu0 %v1087
    %1465 = vmatpush1.bf16.msra.mxu0 %v1086
    %1466 = vmatprep.subr.bf16.mxu0 %v1090
    %1467 = vmatpush1.bf16.msra.mxu0 %v1089
    %1468 = vmatprep.subr.bf16.mxu0 %v1093
    %1469 = vmatpush1.bf16.msra.mxu0 %v1092
    %1470 = vmatprep.subr.bf16.mxu0 %v1096
    %1471 = vmatpush1.bf16.msra.mxu0 %v1095
    %1472 = vmatprep.subr.bf16.mxu0 %v1099
    %1473 = vmatpush1.bf16.msra.mxu0 %v1098
    %1474 = vmatprep.subr.bf16.mxu0 %v1102
    %1475 = vmatpush1.bf16.msra.mxu0 %v1101
    %1476 = vmatprep.subr.bf16.mxu0 %v1105
    %1477 = vmatpush1.bf16.msra.mxu0 %v1104
    %1478 = vmatprep.subr.bf16.mxu0 %v1108
    %1479 = vmatpush1.bf16.msra.mxu0 %v1107
    %1480 = vmatprep.subr.bf16.mxu0 %v1111
    %1481 = vmatpush1.bf16.msra.mxu0 %v1110
    %1482 = vmatprep.subr.bf16.mxu0 %v1114
    %1483 = vmatpush1.bf16.msra.mxu0 %v1113
    %1484 = vmatprep.mubr.bf16.mxu0 %v148
    %1485 = vmatmul.mubr.bf16.gmra.mrb[0].mxu0 %v147
    %v1486 = vpop.f32.mrb[0].mxu0
    %v1487 = vadd.f32 %v416, %v1486
    %v1488 = vpop.f32.mrb[0].mxu0
    %v1489 = vadd.f32 %v420, %v1488
    %v1490 = vpop.f32.mrb[0].mxu0
    %v1491 = vpop.f32.mrb[0].mxu0
    %1492 = vdwg.mxu0
    %1493 = vmatprep.subr.bf16.mxu0 %v1117
    %1494 = vmatpush1.bf16.msra.mxu0 %v1116
    %1495 = vmatprep.subr.bf16.mxu0 %v1120
    %1496 = vmatpush1.bf16.msra.mxu0 %v1119
    %1497 = vmatprep.subr.bf16.mxu0 %v1123
    %1498 = vmatpush1.bf16.msra.mxu0 %v1122
    %1499 = vmatprep.subr.bf16.mxu0 %v1126
    %1500 = vmatpush1.bf16.msra.mxu0 %v1125
    %1501 = vmatprep.subr.bf16.mxu0 %v1129
    %1502 = vmatpush1.bf16.msra.mxu0 %v1128
    %1503 = vmatprep.subr.bf16.mxu0 %v1132
    %1504 = vmatpush1.bf16.msra.mxu0 %v1131
    %1505 = vmatprep.subr.bf16.mxu0 %v1135
    %1506 = vmatpush1.bf16.msra.mxu0 %v1134
    %1507 = vmatprep.subr.bf16.mxu0 %v1138
    %1508 = vmatpush1.bf16.msra.mxu0 %v1137
    %1509 = vmatprep.subr.bf16.mxu0 %v1141
    %1510 = vmatpush1.bf16.msra.mxu0 %v1140
    %1511 = vmatprep.subr.bf16.mxu0 %v1144
    %1512 = vmatpush1.bf16.msra.mxu0 %v1143
    %1513 = vmatprep.subr.bf16.mxu0 %v1147
    %1514 = vmatpush1.bf16.msra.mxu0 %v1146
    %1515 = vmatprep.subr.bf16.mxu0 %v1150
    %1516 = vmatpush1.bf16.msra.mxu0 %v1149
    %1517 = vmatprep.subr.bf16.mxu0 %v1153
    %1518 = vmatpush1.bf16.msra.mxu0 %v1152
    %1519 = vmatprep.subr.bf16.mxu0 %v1156
    %1520 = vmatpush1.bf16.msra.mxu0 %v1155
    %1521 = vmatprep.subr.bf16.mxu0 %v1159
    %1522 = vmatpush1.bf16.msra.mxu0 %v1158
    %1523 = vmatprep.subr.bf16.mxu0 %v1162
    %1524 = vmatpush1.bf16.msra.mxu0 %v1161
    %1525 = vmatprep.mubr.bf16.mxu0 %v150
    %1526 = vmatmul.mubr.bf16.gmra.mrb[0].mxu0 %v149
    %v1527 = vpop.f32.mrb[0].mxu0
    %v1528 = vadd.f32 %v1487, %v1527
    %v1529 = vpop.f32.mrb[0].mxu0
    %v1530 = vadd.f32 %v1489, %v1529
    %v1531 = vpop.f32.mrb[0].mxu0
    %v1532 = vpop.f32.mrb[0].mxu0
    %1533 = vdwg.mxu0
    %1534 = vmatprep.subr.bf16.mxu0 %v1165
    %1535 = vmatpush1.bf16.msra.mxu0 %v1164
    %1536 = vmatprep.subr.bf16.mxu0 %v1168
    %1537 = vmatpush1.bf16.msra.mxu0 %v1167
    %1538 = vmatprep.subr.bf16.mxu0 %v1171
    %1539 = vmatpush1.bf16.msra.mxu0 %v1170
    %1540 = vmatprep.subr.bf16.mxu0 %v1174
    %1541 = vmatpush1.bf16.msra.mxu0 %v1173
    %1542 = vmatprep.subr.bf16.mxu0 %v1177
    %1543 = vmatpush1.bf16.msra.mxu0 %v1176
    %1544 = vmatprep.subr.bf16.mxu0 %v1180
    %1545 = vmatpush1.bf16.msra.mxu0 %v1179
    %1546 = vmatprep.subr.bf16.mxu0 %v1183
    %1547 = vmatpush1.bf16.msra.mxu0 %v1182
    %1548 = vmatprep.subr.bf16.mxu0 %v1186
    %1549 = vmatpush1.bf16.msra.mxu0 %v1185
    %1550 = vmatprep.subr.bf16.mxu0 %v1189
    %1551 = vmatpush1.bf16.msra.mxu0 %v1188
    %1552 = vmatprep.subr.bf16.mxu0 %v1192
    %1553 = vmatpush1.bf16.msra.mxu0 %v1191
    %1554 = vmatprep.subr.bf16.mxu0 %v1195
    %1555 = vmatpush1.bf16.msra.mxu0 %v1194
    %1556 = vmatprep.subr.bf16.mxu0 %v1198
    %1557 = vmatpush1.bf16.msra.mxu0 %v1197
    %1558 = vmatprep.subr.bf16.mxu0 %v1201
    %1559 = vmatpush1.bf16.msra.mxu0 %v1200
    %1560 = vmatprep.subr.bf16.mxu0 %v1204
    %1561 = vmatpush1.bf16.msra.mxu0 %v1203
    %1562 = vmatprep.subr.bf16.mxu0 %v1207
    %1563 = vmatpush1.bf16.msra.mxu0 %v1206
    %1564 = vmatprep.subr.bf16.mxu0 %v1210
    %1565 = vmatpush1.bf16.msra.mxu0 %v1209
    %1566 = vmatprep.mubr.bf16.mxu0 %v152
    %1567 = vmatmul.mubr.bf16.gmra.mrb[0].mxu0 %v151
    %v1568 = vpop.f32.mrb[0].mxu0
    %v1569 = vadd.f32 %v1528, %v1568
    %v1570 = vpop.f32.mrb[0].mxu0
    %v1571 = vadd.f32 %v1530, %v1570
    %v1572 = vpop.f32.mrb[0].mxu0
    %v1573 = vpop.f32.mrb[0].mxu0
    %1574 = vdwg.mxu0
    %1575 = vmatprep.subr.bf16.mxu0 %v1213
    %1576 = vmatpush1.bf16.msra.mxu0 %v1212
    %1577 = vmatprep.subr.bf16.mxu0 %v1216
    %1578 = vmatpush1.bf16.msra.mxu0 %v1215
    %1579 = vmatprep.subr.bf16.mxu0 %v1219
    %1580 = vmatpush1.bf16.msra.mxu0 %v1218
    %1581 = vmatprep.subr.bf16.mxu0 %v1222
    %1582 = vmatpush1.bf16.msra.mxu0 %v1221
    %1583 = vmatprep.subr.bf16.mxu0 %v1225
    %1584 = vmatpush1.bf16.msra.mxu0 %v1224
    %1585 = vmatprep.subr.bf16.mxu0 %v1228
    %1586 = vmatpush1.bf16.msra.mxu0 %v1227
    %1587 = vmatprep.subr.bf16.mxu0 %v1231
    %1588 = vmatpush1.bf16.msra.mxu0 %v1230
    %1589 = vmatprep.subr.bf16.mxu0 %v1234
    %1590 = vmatpush1.bf16.msra.mxu0 %v1233
    %1591 = vmatprep.subr.bf16.mxu0 %v1237
    %1592 = vmatpush1.bf16.msra.mxu0 %v1236
    %1593 = vmatprep.subr.bf16.mxu0 %v1240
    %1594 = vmatpush1.bf16.msra.mxu0 %v1239
    %1595 = vmatprep.subr.bf16.mxu0 %v1243
    %1596 = vmatpush1.bf16.msra.mxu0 %v1242
    %1597 = vmatprep.subr.bf16.mxu0 %v1246
    %1598 = vmatpush1.bf16.msra.mxu0 %v1245
    %1599 = vmatprep.subr.bf16.mxu0 %v1249
    %1600 = vmatpush1.bf16.msra.mxu0 %v1248
    %1601 = vmatprep.subr.bf16.mxu0 %v1252
    %1602 = vmatpush1.bf16.msra.mxu0 %v1251
    %1603 = vmatprep.subr.bf16.mxu0 %v1255
    %1604 = vmatpush1.bf16.msra.mxu0 %v1254
    %1605 = vmatprep.subr.bf16.mxu0 %v1258
    %1606 = vmatpush1.bf16.msra.mxu0 %v1257
    %1607 = vmatprep.mubr.bf16.mxu0 %v154
    %1608 = vmatmul.mubr.bf16.gmra.mrb[0].mxu0 %v153
    %v1609 = vpop.f32.mrb[0].mxu0
    %v1610 = vadd.f32 %v1569, %v1609
    %v1611 = vpop.f32.mrb[0].mxu0
    %v1612 = vadd.f32 %v1571, %v1611
    %v1613 = vpop.f32.mrb[0].mxu0
    %v1614 = vpop.f32.mrb[0].mxu0
    %1615 = vdwg.mxu0
    %1616 = vmatprep.subr.bf16.mxu0 0
    %1617 = vmatpush1.bf16.msra.mxu0 %v1070
    %1618 = vmatprep.subr.bf16.mxu0 0
    %1619 = vmatpush1.bf16.msra.mxu0 %v1073
    %1620 = vmatprep.subr.bf16.mxu0 0
    %1621 = vmatpush1.bf16.msra.mxu0 %v1076
    %1622 = vmatprep.subr.bf16.mxu0 0
    %1623 = vmatpush1.bf16.msra.mxu0 %v1079
    %1624 = vmatprep.subr.bf16.mxu0 0
    %1625 = vmatpush1.bf16.msra.mxu0 %v1082
    %1626 = vmatprep.subr.bf16.mxu0 0
    %1627 = vmatpush1.bf16.msra.mxu0 %v1085
    %1628 = vmatprep.subr.bf16.mxu0 0
    %1629 = vmatpush1.bf16.msra.mxu0 %v1088
    %1630 = vmatprep.subr.bf16.mxu0 0
    %1631 = vmatpush1.bf16.msra.mxu0 %v1091
    %1632 = vmatprep.subr.bf16.mxu0 0
    %1633 = vmatpush1.bf16.msra.mxu0 %v1094
    %1634 = vmatprep.subr.bf16.mxu0 0
    %1635 = vmatpush1.bf16.msra.mxu0 %v1097
    %1636 = vmatprep.subr.bf16.mxu0 0
    %1637 = vmatpush1.bf16.msra.mxu0 %v1100
    %1638 = vmatprep.subr.bf16.mxu0 0
    %1639 = vmatpush1.bf16.msra.mxu0 %v1103
    %1640 = vmatprep.subr.bf16.mxu0 0
    %1641 = vmatpush1.bf16.msra.mxu0 %v1106
    %1642 = vmatprep.subr.bf16.mxu0 0
    %1643 = vmatpush1.bf16.msra.mxu0 %v1109
    %1644 = vmatprep.subr.bf16.mxu0 0
    %1645 = vmatpush1.bf16.msra.mxu0 %v1112
    %1646 = vmatprep.subr.bf16.mxu0 0
    %1647 = vmatpush1.bf16.msra.mxu0 %v1115
    %1648 = vmatprep.mubr.bf16.mxu0 %v148
    %1649 = vmatmul.mubr.bf16.gmra.mrb[0].mxu0 %v147
    %v1650 = vpop.f32.mrb[0].mxu0
    %v1651 = vadd.f32 %v424, %v1650
    %v1652 = vpop.f32.mrb[0].mxu0
    %v1653 = vpop.f32.mrb[0].mxu0
    %v1654 = vpop.f32.mrb[0].mxu0
    %1655 = vdwg.mxu0
    %1656 = vmatprep.subr.bf16.mxu0 0
    %1657 = vmatpush1.bf16.msra.mxu0 %v1118
    %1658 = vmatprep.subr.bf16.mxu0 0
    %1659 = vmatpush1.bf16.msra.mxu0 %v1121
    %1660 = vmatprep.subr.bf16.mxu0 0
    %1661 = vmatpush1.bf16.msra.mxu0 %v1124
    %1662 = vmatprep.subr.bf16.mxu0 0
    %1663 = vmatpush1.bf16.msra.mxu0 %v1127
    %1664 = vmatprep.subr.bf16.mxu0 0
    %1665 = vmatpush1.bf16.msra.mxu0 %v1130
    %1666 = vmatprep.subr.bf16.mxu0 0
    %1667 = vmatpush1.bf16.msra.mxu0 %v1133
    %1668 = vmatprep.subr.bf16.mxu0 0
    %1669 = vmatpush1.bf16.msra.mxu0 %v1136
    %1670 = vmatprep.subr.bf16.mxu0 0
    %1671 = vmatpush1.bf16.msra.mxu0 %v1139
    %1672 = vmatprep.subr.bf16.mxu0 0
    %1673 = vmatpush1.bf16.msra.mxu0 %v1142
    %1674 = vmatprep.subr.bf16.mxu0 0
    %1675 = vmatpush1.bf16.msra.mxu0 %v1145
    %1676 = vmatprep.subr.bf16.mxu0 0
    %1677 = vmatpush1.bf16.msra.mxu0 %v1148
    %1678 = vmatprep.subr.bf16.mxu0 0
    %1679 = vmatpush1.bf16.msra.mxu0 %v1151
    %1680 = vmatprep.subr.bf16.mxu0 0
    %1681 = vmatpush1.bf16.msra.mxu0 %v1154
    %1682 = vmatprep.subr.bf16.mxu0 0
    %1683 = vmatpush1.bf16.msra.mxu0 %v1157
    %1684 = vmatprep.subr.bf16.mxu0 0
    %1685 = vmatpush1.bf16.msra.mxu0 %v1160
    %1686 = vmatprep.subr.bf16.mxu0 0
    %1687 = vmatpush1.bf16.msra.mxu0 %v1163
    %1688 = vmatprep.mubr.bf16.mxu0 %v150
    %1689 = vmatmul.mubr.bf16.gmra.mrb[0].mxu0 %v149
    %v1690 = vpop.f32.mrb[0].mxu0
    %v1691 = vadd.f32 %v1651, %v1690
    %v1692 = vpop.f32.mrb[0].mxu0
    %v1693 = vpop.f32.mrb[0].mxu0
    %v1694 = vpop.f32.mrb[0].mxu0
    %1695 = vdwg.mxu0
    %1696 = vmatprep.subr.bf16.mxu0 0
    %1697 = vmatpush1.bf16.msra.mxu0 %v1166
    %1698 = vmatprep.subr.bf16.mxu0 0
    %1699 = vmatpush1.bf16.msra.mxu0 %v1169
    %1700 = vmatprep.subr.bf16.mxu0 0
    %1701 = vmatpush1.bf16.msra.mxu0 %v1172
    %1702 = vmatprep.subr.bf16.mxu0 0
    %1703 = vmatpush1.bf16.msra.mxu0 %v1175
    %1704 = vmatprep.subr.bf16.mxu0 0
    %1705 = vmatpush1.bf16.msra.mxu0 %v1178
    %1706 = vmatprep.subr.bf16.mxu0 0
    %1707 = vmatpush1.bf16.msra.mxu0 %v1181
    %1708 = vmatprep.subr.bf16.mxu0 0
    %1709 = vmatpush1.bf16.msra.mxu0 %v1184
    %1710 = vmatprep.subr.bf16.mxu0 0
    %1711 = vmatpush1.bf16.msra.mxu0 %v1187
    %1712 = vmatprep.subr.bf16.mxu0 0
    %1713 = vmatpush1.bf16.msra.mxu0 %v1190
    %1714 = vmatprep.subr.bf16.mxu0 0
    %1715 = vmatpush1.bf16.msra.mxu0 %v1193
    %1716 = vmatprep.subr.bf16.mxu0 0
    %1717 = vmatpush1.bf16.msra.mxu0 %v1196
    %1718 = vmatprep.subr.bf16.mxu0 0
    %1719 = vmatpush1.bf16.msra.mxu0 %v1199
    %1720 = vmatprep.subr.bf16.mxu0 0
    %1721 = vmatpush1.bf16.msra.mxu0 %v1202
    %1722 = vmatprep.subr.bf16.mxu0 0
    %1723 = vmatpush1.bf16.msra.mxu0 %v1205
    %1724 = vmatprep.subr.bf16.mxu0 0
    %1725 = vmatpush1.bf16.msra.mxu0 %v1208
    %1726 = vmatprep.subr.bf16.mxu0 0
    %1727 = vmatpush1.bf16.msra.mxu0 %v1211
    %1728 = vmatprep.mubr.bf16.mxu0 %v152
    %1729 = vmatmul.mubr.bf16.gmra.mrb[0].mxu0 %v151
    %v1730 = vpop.f32.mrb[0].mxu0
    %v1731 = vadd.f32 %v1691, %v1730
    %v1732 = vpop.f32.mrb[0].mxu0
    %v1733 = vpop.f32.mrb[0].mxu0
    %v1734 = vpop.f32.mrb[0].mxu0
    %1735 = vdwg.mxu0
    %1736 = vmatprep.subr.bf16.mxu0 0
    %1737 = vmatpush1.bf16.msra.mxu0 %v1214
    %1738 = vmatprep.subr.bf16.mxu0 0
    %1739 = vmatpush1.bf16.msra.mxu0 %v1217
    %1740 = vmatprep.subr.bf16.mxu0 0
    %1741 = vmatpush1.bf16.msra.mxu0 %v1220
    %1742 = vmatprep.subr.bf16.mxu0 0
    %1743 = vmatpush1.bf16.msra.mxu0 %v1223
    %1744 = vmatprep.subr.bf16.mxu0 0
    %1745 = vmatpush1.bf16.msra.mxu0 %v1226
    %1746 = vmatprep.subr.bf16.mxu0 0
    %1747 = vmatpush1.bf16.msra.mxu0 %v1229
    %1748 = vmatprep.subr.bf16.mxu0 0
    %1749 = vmatpush1.bf16.msra.mxu0 %v1232
    %1750 = vmatprep.subr.bf16.mxu0 0
    %1751 = vmatpush1.bf16.msra.mxu0 %v1235
    %1752 = vmatprep.subr.bf16.mxu0 0
    %1753 = vmatpush1.bf16.msra.mxu0 %v1238
    %1754 = vmatprep.subr.bf16.mxu0 0
    %1755 = vmatpush1.bf16.msra.mxu0 %v1241
    %1756 = vmatprep.subr.bf16.mxu0 0
    %1757 = vmatpush1.bf16.msra.mxu0 %v1244
    %1758 = vmatprep.subr.bf16.mxu0 0
    %1759 = vmatpush1.bf16.msra.mxu0 %v1247
    %1760 = vmatprep.subr.bf16.mxu0 0
    %1761 = vmatpush1.bf16.msra.mxu0 %v1250
    %1762 = vmatprep.subr.bf16.mxu0 0
    %1763 = vmatpush1.bf16.msra.mxu0 %v1253
    %1764 = vmatprep.subr.bf16.mxu0 0
    %1765 = vmatpush1.bf16.msra.mxu0 %v1256
    %1766 = vmatprep.subr.bf16.mxu0 0
    %1767 = vmatpush1.bf16.msra.mxu0 %v1259
    %1768 = vmatprep.mubr.bf16.mxu0 %v154
    %1769 = vmatmul.mubr.bf16.gmra.mrb[0].mxu0 %v153
    %v1770 = vpop.f32.mrb[0].mxu0
    %v1771 = vadd.f32 %v1731, %v1770
    %v1772 = vpop.f32.mrb[0].mxu0
    %v1773 = vpop.f32.mrb[0].mxu0
    %v1774 = vpop.f32.mrb[0].mxu0
    %1775 = vdwg.mxu0
    %v1776 = vmax.f32 %v1610, 0.0
    %v1777 = vmax.f32 %v1612, 0.0
    %v1778 = vmax.f32 %v1771, 0.0
    %v1779 = vpack.c.bf16 %v1776, %v1776
    %v1780 = vpack.c.bf16 %v1777, %v1777
    %v1781 = vpack.c.bf16 %v1778, %v1778
    %v1782 = vld [vmem:[#allocation7] sm:$0xff]
    %v1783 = vld [vmem:[#allocation7 + $0x8] sm:$0xf]
    %v1784 = vld [vmem:[#allocation7 + $0xc] sm:$0xff]
    %v1785 = vld [vmem:[#allocation7 + $0x14] sm:$0xf]
    %v1786 = vld [vmem:[#allocation7 + $0x18] sm:$0xff]
    %v1787 = vld [vmem:[#allocation7 + $0x20] sm:$0xf]
    %v1788 = vld [vmem:[#allocation7 + $0x24] sm:$0xff]
    %v1789 = vld [vmem:[#allocation7 + $0x2c] sm:$0xf]
    %v1790 = vld [vmem:[#allocation7 + $0x30] sm:$0xff]
    %v1791 = vld [vmem:[#allocation7 + $0x38] sm:$0xf]
    %v1792 = vld [vmem:[#allocation7 + $0x3c] sm:$0xff]
    %v1793 = vld [vmem:[#allocation7 + $0x44] sm:$0xf]
    %v1794 = vld [vmem:[#allocation7 + $0x48] sm:$0xff]
    %v1795 = vld [vmem:[#allocation7 + $0x50] sm:$0xf]
    %v1796 = vld [vmem:[#allocation7 + $0x54] sm:$0xff]
    %v1797 = vld [vmem:[#allocation7 + $0x5c] sm:$0xf]
    %v1798 = vld [vmem:[#allocation7 + $0x60] sm:$0xff]
    %v1799 = vld [vmem:[#allocation7 + $0x68] sm:$0xf]
    %v1800 = vld [vmem:[#allocation7 + $0x6c] sm:$0xff]
    %v1801 = vld [vmem:[#allocation7 + $0x74] sm:$0xf]
    %v1802 = vld [vmem:[#allocation7 + $0x78] sm:$0xff]
    %v1803 = vld [vmem:[#allocation7 + $0x80] sm:$0xf]
    %v1804 = vld [vmem:[#allocation7 + $0x84] sm:$0xff]
    %v1805 = vld [vmem:[#allocation7 + $0x8c] sm:$0xf]
    %v1806 = vld [vmem:[#allocation7 + $0x90] sm:$0xff]
    %v1807 = vld [vmem:[#allocation7 + $0x98] sm:$0xf]
    %v1808 = vld [vmem:[#allocation7 + $0x9c] sm:$0xff]
    %v1809 = vld [vmem:[#allocation7 + $0xa4] sm:$0xf]
    %v1810 = vld [vmem:[#allocation7 + $0xa8] sm:$0xff]
    %v1811 = vld [vmem:[#allocation7 + $0xb0] sm:$0xf]
    %v1812 = vld [vmem:[#allocation7 + $0xb4] sm:$0xff]
    %v1813 = vld [vmem:[#allocation7 + $0xbc] sm:$0xf]
    %v1814 = vld [vmem:[#allocation7 + $0xc0] sm:$0xff]
    %v1815 = vld [vmem:[#allocation7 + $0xc8] sm:$0xf]
    %v1816 = vld [vmem:[#allocation7 + $0xcc] sm:$0xff]
    %v1817 = vld [vmem:[#allocation7 + $0xd4] sm:$0xf]
    %v1818 = vld [vmem:[#allocation7 + $0xd8] sm:$0xff]
    %v1819 = vld [vmem:[#allocation7 + $0xe0] sm:$0xf]
    %v1820 = vld [vmem:[#allocation7 + $0xe4] sm:$0xff]
    %v1821 = vld [vmem:[#allocation7 + $0xec] sm:$0xf]
    %v1822 = vld [vmem:[#allocation7 + $0xf0] sm:$0xff]
    %v1823 = vld [vmem:[#allocation7 + $0xf8] sm:$0xf]
    %v1824 = vld [vmem:[#allocation7 + $0xfc] sm:$0xff]
    %v1825 = vld [vmem:[#allocation7 + $0x104] sm:$0xf]
    %v1826 = vld [vmem:[#allocation7 + $0x108] sm:$0xff]
    %v1827 = vld [vmem:[#allocation7 + $0x110] sm:$0xf]
    %v1828 = vld [vmem:[#allocation7 + $0x114] sm:$0xff]
    %v1829 = vld [vmem:[#allocation7 + $0x11c] sm:$0xf]
    %v1830 = vld [vmem:[#allocation7 + $0x120] sm:$0xff]
    %v1831 = vld [vmem:[#allocation7 + $0x128] sm:$0xf]
    %v1832 = vld [vmem:[#allocation7 + $0x12c] sm:$0xff]
    %v1833 = vld [vmem:[#allocation7 + $0x134] sm:$0xf]
    %v1834 = vld [vmem:[#allocation7 + $0x138] sm:$0xff]
    %v1835 = vld [vmem:[#allocation7 + $0x140] sm:$0xf]
    %v1836 = vld [vmem:[#allocation7 + $0x144] sm:$0xff]
    %v1837 = vld [vmem:[#allocation7 + $0x14c] sm:$0xf]
    %v1838 = vld [vmem:[#allocation7 + $0x150] sm:$0xff]
    %v1839 = vld [vmem:[#allocation7 + $0x158] sm:$0xf]
    %v1840 = vld [vmem:[#allocation7 + $0x15c] sm:$0xff]
    %v1841 = vld [vmem:[#allocation7 + $0x164] sm:$0xf]
    %v1842 = vld [vmem:[#allocation7 + $0x168] sm:$0xff]
    %v1843 = vld [vmem:[#allocation7 + $0x170] sm:$0xf]
    %v1844 = vld [vmem:[#allocation7 + $0x174] sm:$0xff]
    %v1845 = vld [vmem:[#allocation7 + $0x17c] sm:$0xf]
    %v1846 = vld [vmem:[#allocation7 + $0x180] sm:$0xff]
    %v1847 = vld [vmem:[#allocation7 + $0x188] sm:$0xf]
    %v1848 = vld [vmem:[#allocation7 + $0x18c] sm:$0xff]
    %v1849 = vld [vmem:[#allocation7 + $0x194] sm:$0xf]
    %v1850 = vld [vmem:[#allocation7 + $0x198] sm:$0xff]
    %v1851 = vld [vmem:[#allocation7 + $0x1a0] sm:$0xf]
    %v1852 = vld [vmem:[#allocation7 + $0x1a4] sm:$0xff]
    %v1853 = vld [vmem:[#allocation7 + $0x1ac] sm:$0xf]
    %v1854 = vld [vmem:[#allocation7 + $0x1b0] sm:$0xff]
    %v1855 = vld [vmem:[#allocation7 + $0x1b8] sm:$0xf]
    %v1856 = vld [vmem:[#allocation7 + $0x1bc] sm:$0xff]
    %v1857 = vld [vmem:[#allocation7 + $0x1c4] sm:$0xf]
    %v1858 = vld [vmem:[#allocation7 + $0x1c8] sm:$0xff]
    %v1859 = vld [vmem:[#allocation7 + $0x1d0] sm:$0xf]
    %v1860 = vld [vmem:[#allocation7 + $0x1d4] sm:$0xff]
    %v1861 = vld [vmem:[#allocation7 + $0x1dc] sm:$0xf]
    %v1862 = vld [vmem:[#allocation7 + $0x1e0] sm:$0xff]
    %v1863 = vld [vmem:[#allocation7 + $0x1e8] sm:$0xf]
    %v1864 = vld [vmem:[#allocation7 + $0x1ec] sm:$0xff]
    %v1865 = vld [vmem:[#allocation7 + $0x1f4] sm:$0xf]
    %v1866 = vld [vmem:[#allocation7 + $0x1f8] sm:$0xff]
    %v1867 = vld [vmem:[#allocation7 + $0x200] sm:$0xf]
    %v1868 = vld [vmem:[#allocation7 + $0x204] sm:$0xff]
    %v1869 = vld [vmem:[#allocation7 + $0x20c] sm:$0xf]
    %v1870 = vld [vmem:[#allocation7 + $0x210] sm:$0xff]
    %v1871 = vld [vmem:[#allocation7 + $0x218] sm:$0xf]
    %v1872 = vld [vmem:[#allocation7 + $0x21c] sm:$0xff]
    %v1873 = vld [vmem:[#allocation7 + $0x224] sm:$0xf]
    %v1874 = vld [vmem:[#allocation7 + $0x228] sm:$0xff]
    %v1875 = vld [vmem:[#allocation7 + $0x230] sm:$0xf]
    %v1876 = vld [vmem:[#allocation7 + $0x234] sm:$0xff]
    %v1877 = vld [vmem:[#allocation7 + $0x23c] sm:$0xf]
    %v1878 = vld [vmem:[%s4] sm:$0x7]
    %v1880 = vlaneseq
    %v1881 = vshrl.u32 %v1880, 7
    %v1882 = vsub.s32 0, %v1881
    %v1883 = vrot.slane %v1878, %v1882
    %v1884 = vlaneseq
    %v1885 = vshrl.u32 %v1884, 7
    %v1886 = vsub.s32 1, %v1885
    %v1887 = vrot.slane %v1878, %v1886
    %v1888 = vlaneseq
    %v1889 = vshrl.u32 %v1888, 7
    %v1890 = vsub.s32 2, %v1889
    %v1891 = vrot.slane %v1878, %v1890
    %v1991 = vunpack.c.l.b16 %v1782
    %v1992 = vunpack.c.h.b16 %v1782
    %v1993 = vunpack.c.l.b16 %v1783
    %v1994 = vunpack.c.l.b16 %v1784
    %v1995 = vunpack.c.h.b16 %v1784
    %v1996 = vunpack.c.l.b16 %v1785
    %v1997 = vunpack.c.l.b16 %v1786
    %v1998 = vunpack.c.h.b16 %v1786
    %v1999 = vunpack.c.l.b16 %v1787
    %v2000 = vunpack.c.l.b16 %v1788
    %v2001 = vunpack.c.h.b16 %v1788
    %v2002 = vunpack.c.l.b16 %v1789
    %v2003 = vunpack.c.l.b16 %v1790
    %v2004 = vunpack.c.h.b16 %v1790
    %v2005 = vunpack.c.l.b16 %v1791
    %v2006 = vunpack.c.l.b16 %v1792
    %v2007 = vunpack.c.h.b16 %v1792
    %v2008 = vunpack.c.l.b16 %v1793
    %v2009 = vunpack.c.l.b16 %v1794
    %v2010 = vunpack.c.h.b16 %v1794
    %v2011 = vunpack.c.l.b16 %v1795
    %v2012 = vunpack.c.l.b16 %v1796
    %v2013 = vunpack.c.h.b16 %v1796
    %v2014 = vunpack.c.l.b16 %v1797
    %v2015 = vunpack.c.l.b16 %v1798
    %v2016 = vunpack.c.h.b16 %v1798
    %v2017 = vunpack.c.l.b16 %v1799
    %v2018 = vunpack.c.l.b16 %v1800
    %v2019 = vunpack.c.h.b16 %v1800
    %v2020 = vunpack.c.l.b16 %v1801
    %v2021 = vunpack.c.l.b16 %v1802
    %v2022 = vunpack.c.h.b16 %v1802
    %v2023 = vunpack.c.l.b16 %v1803
    %v2024 = vunpack.c.l.b16 %v1804
    %v2025 = vunpack.c.h.b16 %v1804
    %v2026 = vunpack.c.l.b16 %v1805
    %v2027 = vunpack.c.l.b16 %v1806
    %v2028 = vunpack.c.h.b16 %v1806
    %v2029 = vunpack.c.l.b16 %v1807
    %v2030 = vunpack.c.l.b16 %v1808
    %v2031 = vunpack.c.h.b16 %v1808
    %v2032 = vunpack.c.l.b16 %v1809
    %v2033 = vunpack.c.l.b16 %v1810
    %v2034 = vunpack.c.h.b16 %v1810
    %v2035 = vunpack.c.l.b16 %v1811
    %v2036 = vunpack.c.l.b16 %v1812
    %v2037 = vunpack.c.h.b16 %v1812
    %v2038 = vunpack.c.l.b16 %v1813
    %v2039 = vunpack.c.l.b16 %v1814
    %v2040 = vunpack.c.h.b16 %v1814
    %v2041 = vunpack.c.l.b16 %v1815
    %v2042 = vunpack.c.l.b16 %v1816
    %v2043 = vunpack.c.h.b16 %v1816
    %v2044 = vunpack.c.l.b16 %v1817
    %v2045 = vunpack.c.l.b16 %v1818
    %v2046 = vunpack.c.h.b16 %v1818
    %v2047 = vunpack.c.l.b16 %v1819
    %v2048 = vunpack.c.l.b16 %v1820
    %v2049 = vunpack.c.h.b16 %v1820
    %v2050 = vunpack.c.l.b16 %v1821
    %v2051 = vunpack.c.l.b16 %v1822
    %v2052 = vunpack.c.h.b16 %v1822
    %v2053 = vunpack.c.l.b16 %v1823
    %v2054 = vunpack.c.l.b16 %v1824
    %v2055 = vunpack.c.h.b16 %v1824
    %v2056 = vunpack.c.l.b16 %v1825
    %v2057 = vunpack.c.l.b16 %v1826
    %v2058 = vunpack.c.h.b16 %v1826
    %v2059 = vunpack.c.l.b16 %v1827
    %v2060 = vunpack.c.l.b16 %v1828
    %v2061 = vunpack.c.h.b16 %v1828
    %v2062 = vunpack.c.l.b16 %v1829
    %v2063 = vunpack.c.l.b16 %v1830
    %v2064 = vunpack.c.h.b16 %v1830
    %v2065 = vunpack.c.l.b16 %v1831
    %v2066 = vunpack.c.l.b16 %v1832
    %v2067 = vunpack.c.h.b16 %v1832
    %v2068 = vunpack.c.l.b16 %v1833
    %v2069 = vunpack.c.l.b16 %v1834
    %v2070 = vunpack.c.h.b16 %v1834
    %v2071 = vunpack.c.l.b16 %v1835
    %v2072 = vunpack.c.l.b16 %v1836
    %v2073 = vunpack.c.h.b16 %v1836
    %v2074 = vunpack.c.l.b16 %v1837
    %v2075 = vunpack.c.l.b16 %v1838
    %v2076 = vunpack.c.h.b16 %v1838
    %v2077 = vunpack.c.l.b16 %v1839
    %v2078 = vunpack.c.l.b16 %v1840
    %v2079 = vunpack.c.h.b16 %v1840
    %v2080 = vunpack.c.l.b16 %v1841
    %v2081 = vunpack.c.l.b16 %v1842
    %v2082 = vunpack.c.h.b16 %v1842
    %v2083 = vunpack.c.l.b16 %v1843
    %v2084 = vunpack.c.l.b16 %v1844
    %v2085 = vunpack.c.h.b16 %v1844
    %v2086 = vunpack.c.l.b16 %v1845
    %v2087 = vunpack.c.l.b16 %v1846
    %v2088 = vunpack.c.h.b16 %v1846
    %v2089 = vunpack.c.l.b16 %v1847
    %v2090 = vunpack.c.l.b16 %v1848
    %v2091 = vunpack.c.h.b16 %v1848
    %v2092 = vunpack.c.l.b16 %v1849
    %v2093 = vunpack.c.l.b16 %v1850
    %v2094 = vunpack.c.h.b16 %v1850
    %v2095 = vunpack.c.l.b16 %v1851
    %v2096 = vunpack.c.l.b16 %v1852
    %v2097 = vunpack.c.h.b16 %v1852
    %v2098 = vunpack.c.l.b16 %v1853
    %v2099 = vunpack.c.l.b16 %v1854
    %v2100 = vunpack.c.h.b16 %v1854
    %v2101 = vunpack.c.l.b16 %v1855
    %v2102 = vunpack.c.l.b16 %v1856
    %v2103 = vunpack.c.h.b16 %v1856
    %v2104 = vunpack.c.l.b16 %v1857
    %v2105 = vunpack.c.l.b16 %v1858
    %v2106 = vunpack.c.h.b16 %v1858
    %v2107 = vunpack.c.l.b16 %v1859
    %v2108 = vunpack.c.l.b16 %v1860
    %v2109 = vunpack.c.h.b16 %v1860
    %v2110 = vunpack.c.l.b16 %v1861
    %v2111 = vunpack.c.l.b16 %v1862
    %v2112 = vunpack.c.h.b16 %v1862
    %v2113 = vunpack.c.l.b16 %v1863
    %v2114 = vunpack.c.l.b16 %v1864
    %v2115 = vunpack.c.h.b16 %v1864
    %v2116 = vunpack.c.l.b16 %v1865
    %v2117 = vunpack.c.l.b16 %v1866
    %v2118 = vunpack.c.h.b16 %v1866
    %v2119 = vunpack.c.l.b16 %v1867
    %v2120 = vunpack.c.l.b16 %v1868
    %v2121 = vunpack.c.h.b16 %v1868
    %v2122 = vunpack.c.l.b16 %v1869
    %v2123 = vunpack.c.l.b16 %v1870
    %v2124 = vunpack.c.h.b16 %v1870
    %v2125 = vunpack.c.l.b16 %v1871
    %v2126 = vunpack.c.l.b16 %v1872
    %v2127 = vunpack.c.h.b16 %v1872
    %v2128 = vunpack.c.l.b16 %v1873
    %v2129 = vunpack.c.l.b16 %v1874
    %v2130 = vunpack.c.h.b16 %v1874
    %v2131 = vunpack.c.l.b16 %v1875
    %v2132 = vunpack.c.l.b16 %v1876
    %v2133 = vunpack.c.h.b16 %v1876
    %v2134 = vunpack.c.l.b16 %v1877
    %v2135 = vpack.c.b16 %v1994, %v1991
    %v2136 = vpack.c.b16 %v1995, %v1992
    %v2137 = vpack.c.b16 %v1996, %v1993
    %v2138 = vpack.c.b16 %v2000, %v1997
    %v2139 = vpack.c.b16 %v2001, %v1998
    %v2140 = vpack.c.b16 %v2002, %v1999
    %v2141 = vpack.c.b16 %v2006, %v2003
    %v2142 = vpack.c.b16 %v2007, %v2004
    %v2143 = vpack.c.b16 %v2008, %v2005
    %v2144 = vpack.c.b16 %v2012, %v2009
    %v2145 = vpack.c.b16 %v2013, %v2010
    %v2146 = vpack.c.b16 %v2014, %v2011
    %v2147 = vpack.c.b16 %v2018, %v2015
    %v2148 = vpack.c.b16 %v2019, %v2016
    %v2149 = vpack.c.b16 %v2020, %v2017
    %v2150 = vpack.c.b16 %v2024, %v2021
    %v2151 = vpack.c.b16 %v2025, %v2022
    %v2152 = vpack.c.b16 %v2026, %v2023
    %v2153 = vpack.c.b16 %v2030, %v2027
    %v2154 = vpack.c.b16 %v2031, %v2028
    %v2155 = vpack.c.b16 %v2032, %v2029
    %v2156 = vpack.c.b16 %v2036, %v2033
    %v2157 = vpack.c.b16 %v2037, %v2034
    %v2158 = vpack.c.b16 %v2038, %v2035
    %v2159 = vpack.c.b16 %v2042, %v2039
    %v2160 = vpack.c.b16 %v2043, %v2040
    %v2161 = vpack.c.b16 %v2044, %v2041
    %v2162 = vpack.c.b16 %v2048, %v2045
    %v2163 = vpack.c.b16 %v2049, %v2046
    %v2164 = vpack.c.b16 %v2050, %v2047
    %v2165 = vpack.c.b16 %v2054, %v2051
    %v2166 = vpack.c.b16 %v2055, %v2052
    %v2167 = vpack.c.b16 %v2056, %v2053
    %v2168 = vpack.c.b16 %v2060, %v2057
    %v2169 = vpack.c.b16 %v2061, %v2058
    %v2170 = vpack.c.b16 %v2062, %v2059
    %v2171 = vpack.c.b16 %v2066, %v2063
    %v2172 = vpack.c.b16 %v2067, %v2064
    %v2173 = vpack.c.b16 %v2068, %v2065
    %v2174 = vpack.c.b16 %v2072, %v2069
    %v2175 = vpack.c.b16 %v2073, %v2070
    %v2176 = vpack.c.b16 %v2074, %v2071
    %v2177 = vpack.c.b16 %v2078, %v2075
    %v2178 = vpack.c.b16 %v2079, %v2076
    %v2179 = vpack.c.b16 %v2080, %v2077
    %v2180 = vpack.c.b16 %v2084, %v2081
    %v2181 = vpack.c.b16 %v2085, %v2082
    %v2182 = vpack.c.b16 %v2086, %v2083
    %v2183 = vpack.c.b16 %v2090, %v2087
    %v2184 = vpack.c.b16 %v2091, %v2088
    %v2185 = vpack.c.b16 %v2092, %v2089
    %v2186 = vpack.c.b16 %v2096, %v2093
    %v2187 = vpack.c.b16 %v2097, %v2094
    %v2188 = vpack.c.b16 %v2098, %v2095
    %v2189 = vpack.c.b16 %v2102, %v2099
    %v2190 = vpack.c.b16 %v2103, %v2100
    %v2191 = vpack.c.b16 %v2104, %v2101
    %v2192 = vpack.c.b16 %v2108, %v2105
    %v2193 = vpack.c.b16 %v2109, %v2106
    %v2194 = vpack.c.b16 %v2110, %v2107
    %v2195 = vpack.c.b16 %v2114, %v2111
    %v2196 = vpack.c.b16 %v2115, %v2112
    %v2197 = vpack.c.b16 %v2116, %v2113
    %v2198 = vpack.c.b16 %v2120, %v2117
    %v2199 = vpack.c.b16 %v2121, %v2118
    %v2200 = vpack.c.b16 %v2122, %v2119
    %v2201 = vpack.c.b16 %v2126, %v2123
    %v2202 = vpack.c.b16 %v2127, %v2124
    %v2203 = vpack.c.b16 %v2128, %v2125
    %v2204 = vpack.c.b16 %v2132, %v2129
    %v2205 = vpack.c.b16 %v2133, %v2130
    %v2206 = vpack.c.b16 %v2134, %v2131
    %2279 = vmatprep.subr.bf16.mxu0 %v2136
    %2280 = vmatpush1.bf16.msra.mxu0 %v2135
    %2281 = vmatprep.subr.bf16.mxu0 %v2139
    %2282 = vmatpush1.bf16.msra.mxu0 %v2138
    %2283 = vmatprep.subr.bf16.mxu0 %v2142
    %2284 = vmatpush1.bf16.msra.mxu0 %v2141
    %2285 = vmatprep.subr.bf16.mxu0 %v2145
    %2286 = vmatpush1.bf16.msra.mxu0 %v2144
    %2287 = vmatprep.subr.bf16.mxu0 %v2148
    %2288 = vmatpush1.bf16.msra.mxu0 %v2147
    %2289 = vmatprep.subr.bf16.mxu0 %v2151
    %2290 = vmatpush1.bf16.msra.mxu0 %v2150
    %2291 = vmatprep.subr.bf16.mxu0 %v2154
    %2292 = vmatpush1.bf16.msra.mxu0 %v2153
    %2293 = vmatprep.subr.bf16.mxu0 %v2157
    %2294 = vmatpush1.bf16.msra.mxu0 %v2156
    %2295 = vmatprep.subr.bf16.mxu0 %v2160
    %2296 = vmatpush1.bf16.msra.mxu0 %v2159
    %2297 = vmatprep.subr.bf16.mxu0 %v2163
    %2298 = vmatpush1.bf16.msra.mxu0 %v2162
    %2299 = vmatprep.subr.bf16.mxu0 %v2166
    %2300 = vmatpush1.bf16.msra.mxu0 %v2165
    %2301 = vmatprep.subr.bf16.mxu0 %v2169
    %2302 = vmatpush1.bf16.msra.mxu0 %v2168
    %2303 = vmatprep.subr.bf16.mxu0 %v2172
    %2304 = vmatpush1.bf16.msra.mxu0 %v2171
    %2305 = vmatprep.subr.bf16.mxu0 %v2175
    %2306 = vmatpush1.bf16.msra.mxu0 %v2174
    %2307 = vmatprep.subr.bf16.mxu0 %v2178
    %2308 = vmatpush1.bf16.msra.mxu0 %v2177
    %2309 = vmatprep.subr.bf16.mxu0 %v2181
    %2310 = vmatpush1.bf16.msra.mxu0 %v2180
    %2311 = vmatprep.mubr.bf16.mxu0 %v1780
    %2312 = vmatmul.mubr.bf16.gmra.mrb[0].mxu0 %v1779
    %v2313 = vpop.f32.mrb[0].mxu0
    %v2314 = vadd.f32 %v1883, %v2313
    %v2315 = vpop.f32.mrb[0].mxu0
    %v2316 = vadd.f32 %v1887, %v2315
    %v2317 = vpop.f32.mrb[0].mxu0
    %v2318 = vpop.f32.mrb[0].mxu0
    %2319 = vdwg.mxu0
    %2320 = vmatprep.subr.bf16.mxu0 %v2184
    %2321 = vmatpush1.bf16.msra.mxu0 %v2183
    %2322 = vmatprep.subr.bf16.mxu0 %v2187
    %2323 = vmatpush1.bf16.msra.mxu0 %v2186
    %2324 = vmatprep.subr.bf16.mxu0 %v2190
    %2325 = vmatpush1.bf16.msra.mxu0 %v2189
    %2326 = vmatprep.subr.bf16.mxu0 %v2193
    %2327 = vmatpush1.bf16.msra.mxu0 %v2192
    %2328 = vmatprep.subr.bf16.mxu0 %v2196
    %2329 = vmatpush1.bf16.msra.mxu0 %v2195
    %2330 = vmatprep.subr.bf16.mxu0 %v2199
    %2331 = vmatpush1.bf16.msra.mxu0 %v2198
    %2332 = vmatprep.subr.bf16.mxu0 %v2202
    %2333 = vmatpush1.bf16.msra.mxu0 %v2201
    %2334 = vmatprep.subr.bf16.mxu0 %v2205
    %2335 = vmatpush1.bf16.msra.mxu0 %v2204
    %2336 = vmatprep.subr.bf16.mxu0 0
    %2337 = vmatpush1.bf16.msra.mxu0 0
    %2338 = vmatprep.subr.bf16.mxu0 0
    %2339 = vmatpush1.bf16.msra.mxu0 0
    %2340 = vmatprep.subr.bf16.mxu0 0
    %2341 = vmatpush1.bf16.msra.mxu0 0
    %2342 = vmatprep.subr.bf16.mxu0 0
    %2343 = vmatpush1.bf16.msra.mxu0 0
    %2344 = vmatprep.subr.bf16.mxu0 0
    %2345 = vmatpush1.bf16.msra.mxu0 0
    %2346 = vmatprep.subr.bf16.mxu0 0
    %2347 = vmatpush1.bf16.msra.mxu0 0
    %2348 = vmatprep.subr.bf16.mxu0 0
    %2349 = vmatpush1.bf16.msra.mxu0 0
    %2350 = vmatprep.subr.bf16.mxu0 0
    %2351 = vmatpush1.bf16.msra.mxu0 0
    %2352 = vmatprep.mubr.bf16.mxu0 0
    %2353 = vmatmul.mubr.bf16.gmra.mrb[0].mxu0 %v1781
    %v2354 = vpop.f32.mrb[0].mxu0
    %v2355 = vadd.f32 %v2314, %v2354
    %v2356 = vpop.f32.mrb[0].mxu0
    %v2357 = vadd.f32 %v2316, %v2356
    %v2358 = vpop.f32.mrb[0].mxu0
    %v2359 = vpop.f32.mrb[0].mxu0
    %2360 = vdwg.mxu0
    %2361 = vmatprep.subr.bf16.mxu0 0
    %2362 = vmatpush1.bf16.msra.mxu0 %v2137
    %2363 = vmatprep.subr.bf16.mxu0 0
    %2364 = vmatpush1.bf16.msra.mxu0 %v2140
    %2365 = vmatprep.subr.bf16.mxu0 0
    %2366 = vmatpush1.bf16.msra.mxu0 %v2143
    %2367 = vmatprep.subr.bf16.mxu0 0
    %2368 = vmatpush1.bf16.msra.mxu0 %v2146
    %2369 = vmatprep.subr.bf16.mxu0 0
    %2370 = vmatpush1.bf16.msra.mxu0 %v2149
    %2371 = vmatprep.subr.bf16.mxu0 0
    %2372 = vmatpush1.bf16.msra.mxu0 %v2152
    %2373 = vmatprep.subr.bf16.mxu0 0
    %2374 = vmatpush1.bf16.msra.mxu0 %v2155
    %2375 = vmatprep.subr.bf16.mxu0 0
    %2376 = vmatpush1.bf16.msra.mxu0 %v2158
    %2377 = vmatprep.subr.bf16.mxu0 0
    %2378 = vmatpush1.bf16.msra.mxu0 %v2161
    %2379 = vmatprep.subr.bf16.mxu0 0
    %2380 = vmatpush1.bf16.msra.mxu0 %v2164
    %2381 = vmatprep.subr.bf16.mxu0 0
    %2382 = vmatpush1.bf16.msra.mxu0 %v2167
    %2383 = vmatprep.subr.bf16.mxu0 0
    %2384 = vmatpush1.bf16.msra.mxu0 %v2170
    %2385 = vmatprep.subr.bf16.mxu0 0
    %2386 = vmatpush1.bf16.msra.mxu0 %v2173
    %2387 = vmatprep.subr.bf16.mxu0 0
    %2388 = vmatpush1.bf16.msra.mxu0 %v2176
    %2389 = vmatprep.subr.bf16.mxu0 0
    %2390 = vmatpush1.bf16.msra.mxu0 %v2179
    %2391 = vmatprep.subr.bf16.mxu0 0
    %2392 = vmatpush1.bf16.msra.mxu0 %v2182
    %2393 = vmatprep.mubr.bf16.mxu0 %v1780
    %2394 = vmatmul.mubr.bf16.gmra.mrb[0].mxu0 %v1779
    %v2395 = vpop.f32.mrb[0].mxu0
    %v2396 = vadd.f32 %v1891, %v2395
    %v2397 = vpop.f32.mrb[0].mxu0
    %v2398 = vpop.f32.mrb[0].mxu0
    %v2399 = vpop.f32.mrb[0].mxu0
    %2400 = vdwg.mxu0
    %2401 = vmatprep.subr.bf16.mxu0 0
    %2402 = vmatpush1.bf16.msra.mxu0 %v2185
    %2403 = vmatprep.subr.bf16.mxu0 0
    %2404 = vmatpush1.bf16.msra.mxu0 %v2188
    %2405 = vmatprep.subr.bf16.mxu0 0
    %2406 = vmatpush1.bf16.msra.mxu0 %v2191
    %2407 = vmatprep.subr.bf16.mxu0 0
    %2408 = vmatpush1.bf16.msra.mxu0 %v2194
    %2409 = vmatprep.subr.bf16.mxu0 0
    %2410 = vmatpush1.bf16.msra.mxu0 %v2197
    %2411 = vmatprep.subr.bf16.mxu0 0
    %2412 = vmatpush1.bf16.msra.mxu0 %v2200
    %2413 = vmatprep.subr.bf16.mxu0 0
    %2414 = vmatpush1.bf16.msra.mxu0 %v2203
    %2415 = vmatprep.subr.bf16.mxu0 0
    %2416 = vmatpush1.bf16.msra.mxu0 %v2206
    %2417 = vmatprep.subr.bf16.mxu0 0
    %2418 = vmatpush1.bf16.msra.mxu0 0
    %2419 = vmatprep.subr.bf16.mxu0 0
    %2420 = vmatpush1.bf16.msra.mxu0 0
    %2421 = vmatprep.subr.bf16.mxu0 0
    %2422 = vmatpush1.bf16.msra.mxu0 0
    %2423 = vmatprep.subr.bf16.mxu0 0
    %2424 = vmatpush1.bf16.msra.mxu0 0
    %2425 = vmatprep.subr.bf16.mxu0 0
    %2426 = vmatpush1.bf16.msra.mxu0 0
    %2427 = vmatprep.subr.bf16.mxu0 0
    %2428 = vmatpush1.bf16.msra.mxu0 0
    %2429 = vmatprep.subr.bf16.mxu0 0
    %2430 = vmatpush1.bf16.msra.mxu0 0
    %2431 = vmatprep.subr.bf16.mxu0 0
    %2432 = vmatpush1.bf16.msra.mxu0 0
    %2433 = vmatprep.mubr.bf16.mxu0 0
    %2434 = vmatmul.mubr.bf16.gmra.mrb[0].mxu0 %v1781
    %v2435 = vpop.f32.mrb[0].mxu0
    %v2436 = vadd.f32 %v2396, %v2435
    %v2437 = vpop.f32.mrb[0].mxu0
    %v2438 = vpop.f32.mrb[0].mxu0
    %v2439 = vpop.f32.mrb[0].mxu0
    %2440 = vdwg.mxu0
    %v2441 = vmax.f32 %v2355, 0.0
    %v2442 = vmax.f32 %v2357, 0.0
    %v2443 = vmax.f32 %v2436, 0.0
    %v2444 = vpack.c.bf16 %v2441, %v2441
    %v2445 = vpack.c.bf16 %v2442, %v2442
    %v2446 = vpack.c.bf16 %v2443, %v2443
    %v2447 = vld [vmem:[#allocation8] sm:$0xff]
    %v2448 = vld [vmem:[#allocation8 + $0x8] sm:$0xf]
    %v2449 = vld [vmem:[#allocation8 + $0xc] sm:$0xff]
    %v2450 = vld [vmem:[#allocation8 + $0x14] sm:$0xf]
    %v2451 = vld [vmem:[#allocation8 + $0x18] sm:$0xff]
    %v2452 = vld [vmem:[#allocation8 + $0x20] sm:$0xf]
    %v2453 = vld [vmem:[#allocation8 + $0x24] sm:$0xff]
    %v2454 = vld [vmem:[#allocation8 + $0x2c] sm:$0xf]
    %v2455 = vld [vmem:[#allocation8 + $0x30] sm:$0xff]
    %v2456 = vld [vmem:[#allocation8 + $0x38] sm:$0xf]
    %v2457 = vld [vmem:[#allocation8 + $0x3c] sm:$0xff]
    %v2458 = vld [vmem:[#allocation8 + $0x44] sm:$0xf]
    %v2459 = vld [vmem:[#allocation8 + $0x48] sm:$0xff]
    %v2460 = vld [vmem:[#allocation8 + $0x50] sm:$0xf]
    %v2461 = vld [vmem:[#allocation8 + $0x54] sm:$0xff]
    %v2462 = vld [vmem:[#allocation8 + $0x5c] sm:$0xf]
    %v2463 = vld [vmem:[#allocation8 + $0x60] sm:$0xff]
    %v2464 = vld [vmem:[#allocation8 + $0x68] sm:$0xf]
    %v2465 = vld [vmem:[#allocation8 + $0x6c] sm:$0xff]
    %v2466 = vld [vmem:[#allocation8 + $0x74] sm:$0xf]
    %v2467 = vld [vmem:[#allocation8 + $0x78] sm:$0xff]
    %v2468 = vld [vmem:[#allocation8 + $0x80] sm:$0xf]
    %v2469 = vld [vmem:[#allocation8 + $0x84] sm:$0xff]
    %v2470 = vld [vmem:[#allocation8 + $0x8c] sm:$0xf]
    %v2471 = vld [vmem:[#allocation8 + $0x90] sm:$0xff]
    %v2472 = vld [vmem:[#allocation8 + $0x98] sm:$0xf]
    %v2473 = vld [vmem:[#allocation8 + $0x9c] sm:$0xff]
    %v2474 = vld [vmem:[#allocation8 + $0xa4] sm:$0xf]
    %v2475 = vld [vmem:[#allocation8 + $0xa8] sm:$0xff]
    %v2476 = vld [vmem:[#allocation8 + $0xb0] sm:$0xf]
    %v2477 = vld [vmem:[#allocation8 + $0xb4] sm:$0xff]
    %v2478 = vld [vmem:[#allocation8 + $0xbc] sm:$0xf]
    %v2479 = vld [vmem:[#allocation8 + $0xc0] sm:$0xff]
    %v2480 = vld [vmem:[#allocation8 + $0xc8] sm:$0xf]
    %v2481 = vld [vmem:[#allocation8 + $0xcc] sm:$0xff]
    %v2482 = vld [vmem:[#allocation8 + $0xd4] sm:$0xf]
    %v2483 = vld [vmem:[#allocation8 + $0xd8] sm:$0xff]
    %v2484 = vld [vmem:[#allocation8 + $0xe0] sm:$0xf]
    %v2485 = vld [vmem:[#allocation8 + $0xe4] sm:$0xff]
    %v2486 = vld [vmem:[#allocation8 + $0xec] sm:$0xf]
    %v2487 = vld [vmem:[#allocation8 + $0xf0] sm:$0xff]
    %v2488 = vld [vmem:[#allocation8 + $0xf8] sm:$0xf]
    %v2489 = vld [vmem:[#allocation8 + $0xfc] sm:$0xff]
    %v2490 = vld [vmem:[#allocation8 + $0x104] sm:$0xf]
    %v2491 = vld [vmem:[#allocation8 + $0x108] sm:$0xff]
    %v2492 = vld [vmem:[#allocation8 + $0x110] sm:$0xf]
    %v2493 = vld [vmem:[#allocation8 + $0x114] sm:$0xff]
    %v2494 = vld [vmem:[#allocation8 + $0x11c] sm:$0xf]
    %v2495 = vld [vmem:[#allocation8 + $0x120] sm:$0xff]
    %v2496 = vld [vmem:[#allocation8 + $0x128] sm:$0xf]
    %v2497 = vld [vmem:[#allocation8 + $0x12c] sm:$0xff]
    %v2498 = vld [vmem:[#allocation8 + $0x134] sm:$0xf]
    %v2499 = vld [vmem:[#allocation8 + $0x138] sm:$0xff]
    %v2500 = vld [vmem:[#allocation8 + $0x140] sm:$0xf]
    %v2501 = vld [vmem:[#allocation8 + $0x144] sm:$0xff]
    %v2502 = vld [vmem:[#allocation8 + $0x14c] sm:$0xf]
    %v2503 = vld [vmem:[#allocation8 + $0x150] sm:$0xff]
    %v2504 = vld [vmem:[#allocation8 + $0x158] sm:$0xf]
    %v2505 = vld [vmem:[#allocation8 + $0x15c] sm:$0xff]
    %v2506 = vld [vmem:[#allocation8 + $0x164] sm:$0xf]
    %v2507 = vld [vmem:[#allocation8 + $0x168] sm:$0xff]
    %v2508 = vld [vmem:[#allocation8 + $0x170] sm:$0xf]
    %v2509 = vld [vmem:[#allocation8 + $0x174] sm:$0xff]
    %v2510 = vld [vmem:[#allocation8 + $0x17c] sm:$0xf]
    %v2511 = vld [vmem:[#allocation8 + $0x180] sm:$0xff]
    %v2512 = vld [vmem:[#allocation8 + $0x188] sm:$0xf]
    %v2513 = vld [vmem:[#allocation8 + $0x18c] sm:$0xff]
    %v2514 = vld [vmem:[#allocation8 + $0x194] sm:$0xf]
    %v2515 = vld [vmem:[#allocation8 + $0x198] sm:$0xff]
    %v2516 = vld [vmem:[#allocation8 + $0x1a0] sm:$0xf]
    %v2517 = vld [vmem:[#allocation8 + $0x1a4] sm:$0xff]
    %v2518 = vld [vmem:[#allocation8 + $0x1ac] sm:$0xf]
    %v2519 = vld [vmem:[#allocation8 + $0x1b0] sm:$0xff]
    %v2520 = vld [vmem:[#allocation8 + $0x1b8] sm:$0xf]
    %v2521 = vld [vmem:[#allocation8 + $0x1bc] sm:$0xff]
    %v2522 = vld [vmem:[#allocation8 + $0x1c4] sm:$0xf]
    %v2523 = vld [vmem:[#allocation8 + $0x1c8] sm:$0xff]
    %v2524 = vld [vmem:[#allocation8 + $0x1d0] sm:$0xf]
    %v2525 = vld [vmem:[#allocation8 + $0x1d4] sm:$0xff]
    %v2526 = vld [vmem:[#allocation8 + $0x1dc] sm:$0xf]
    %v2527 = vld [vmem:[#allocation8 + $0x1e0] sm:$0xff]
    %v2528 = vld [vmem:[#allocation8 + $0x1e8] sm:$0xf]
    %v2529 = vld [vmem:[#allocation8 + $0x1ec] sm:$0xff]
    %v2530 = vld [vmem:[#allocation8 + $0x1f4] sm:$0xf]
    %v2531 = vld [vmem:[#allocation8 + $0x1f8] sm:$0xff]
    %v2532 = vld [vmem:[#allocation8 + $0x200] sm:$0xf]
    %v2533 = vld [vmem:[#allocation8 + $0x204] sm:$0xff]
    %v2534 = vld [vmem:[#allocation8 + $0x20c] sm:$0xf]
    %v2535 = vld [vmem:[#allocation8 + $0x210] sm:$0xff]
    %v2536 = vld [vmem:[#allocation8 + $0x218] sm:$0xf]
    %v2537 = vld [vmem:[#allocation8 + $0x21c] sm:$0xff]
    %v2538 = vld [vmem:[#allocation8 + $0x224] sm:$0xf]
    %v2539 = vld [vmem:[#allocation8 + $0x228] sm:$0xff]
    %v2540 = vld [vmem:[#allocation8 + $0x230] sm:$0xf]
    %v2541 = vld [vmem:[#allocation8 + $0x234] sm:$0xff]
    %v2542 = vld [vmem:[#allocation8 + $0x23c] sm:$0xf]
    %v2543 = vld [vmem:[%s6] sm:$0x7]
    %v2545 = vlaneseq
    %v2546 = vshrl.u32 %v2545, 7
    %v2547 = vsub.s32 0, %v2546
    %v2548 = vrot.slane %v2543, %v2547
    %v2549 = vlaneseq
    %v2550 = vshrl.u32 %v2549, 7
    %v2551 = vsub.s32 1, %v2550
    %v2552 = vrot.slane %v2543, %v2551
    %v2553 = vlaneseq
    %v2554 = vshrl.u32 %v2553, 7
    %v2555 = vsub.s32 2, %v2554
    %v2556 = vrot.slane %v2543, %v2555
    %v2656 = vunpack.c.l.b16 %v2447
    %v2657 = vunpack.c.h.b16 %v2447
    %v2658 = vunpack.c.l.b16 %v2448
    %v2659 = vunpack.c.l.b16 %v2449
    %v2660 = vunpack.c.h.b16 %v2449
    %v2661 = vunpack.c.l.b16 %v2450
    %v2662 = vunpack.c.l.b16 %v2451
    %v2663 = vunpack.c.h.b16 %v2451
    %v2664 = vunpack.c.l.b16 %v2452
    %v2665 = vunpack.c.l.b16 %v2453
    %v2666 = vunpack.c.h.b16 %v2453
    %v2667 = vunpack.c.l.b16 %v2454
    %v2668 = vunpack.c.l.b16 %v2455
    %v2669 = vunpack.c.h.b16 %v2455
    %v2670 = vunpack.c.l.b16 %v2456
    %v2671 = vunpack.c.l.b16 %v2457
    %v2672 = vunpack.c.h.b16 %v2457
    %v2673 = vunpack.c.l.b16 %v2458
    %v2674 = vunpack.c.l.b16 %v2459
    %v2675 = vunpack.c.h.b16 %v2459
    %v2676 = vunpack.c.l.b16 %v2460
    %v2677 = vunpack.c.l.b16 %v2461
    %v2678 = vunpack.c.h.b16 %v2461
    %v2679 = vunpack.c.l.b16 %v2462
    %v2680 = vunpack.c.l.b16 %v2463
    %v2681 = vunpack.c.h.b16 %v2463
    %v2682 = vunpack.c.l.b16 %v2464
    %v2683 = vunpack.c.l.b16 %v2465
    %v2684 = vunpack.c.h.b16 %v2465
    %v2685 = vunpack.c.l.b16 %v2466
    %v2686 = vunpack.c.l.b16 %v2467
    %v2687 = vunpack.c.h.b16 %v2467
    %v2688 = vunpack.c.l.b16 %v2468
    %v2689 = vunpack.c.l.b16 %v2469
    %v2690 = vunpack.c.h.b16 %v2469
    %v2691 = vunpack.c.l.b16 %v2470
    %v2692 = vunpack.c.l.b16 %v2471
    %v2693 = vunpack.c.h.b16 %v2471
    %v2694 = vunpack.c.l.b16 %v2472
    %v2695 = vunpack.c.l.b16 %v2473
    %v2696 = vunpack.c.h.b16 %v2473
    %v2697 = vunpack.c.l.b16 %v2474
    %v2698 = vunpack.c.l.b16 %v2475
    %v2699 = vunpack.c.h.b16 %v2475
    %v2700 = vunpack.c.l.b16 %v2476
    %v2701 = vunpack.c.l.b16 %v2477
    %v2702 = vunpack.c.h.b16 %v2477
    %v2703 = vunpack.c.l.b16 %v2478
    %v2704 = vunpack.c.l.b16 %v2479
    %v2705 = vunpack.c.h.b16 %v2479
    %v2706 = vunpack.c.l.b16 %v2480
    %v2707 = vunpack.c.l.b16 %v2481
    %v2708 = vunpack.c.h.b16 %v2481
    %v2709 = vunpack.c.l.b16 %v2482
    %v2710 = vunpack.c.l.b16 %v2483
    %v2711 = vunpack.c.h.b16 %v2483
    %v2712 = vunpack.c.l.b16 %v2484
    %v2713 = vunpack.c.l.b16 %v2485
    %v2714 = vunpack.c.h.b16 %v2485
    %v2715 = vunpack.c.l.b16 %v2486
    %v2716 = vunpack.c.l.b16 %v2487
    %v2717 = vunpack.c.h.b16 %v2487
    %v2718 = vunpack.c.l.b16 %v2488
    %v2719 = vunpack.c.l.b16 %v2489
    %v2720 = vunpack.c.h.b16 %v2489
    %v2721 = vunpack.c.l.b16 %v2490
    %v2722 = vunpack.c.l.b16 %v2491
    %v2723 = vunpack.c.h.b16 %v2491
    %v2724 = vunpack.c.l.b16 %v2492
    %v2725 = vunpack.c.l.b16 %v2493
    %v2726 = vunpack.c.h.b16 %v2493
    %v2727 = vunpack.c.l.b16 %v2494
    %v2728 = vunpack.c.l.b16 %v2495
    %v2729 = vunpack.c.h.b16 %v2495
    %v2730 = vunpack.c.l.b16 %v2496
    %v2731 = vunpack.c.l.b16 %v2497
    %v2732 = vunpack.c.h.b16 %v2497
    %v2733 = vunpack.c.l.b16 %v2498
    %v2734 = vunpack.c.l.b16 %v2499
    %v2735 = vunpack.c.h.b16 %v2499
    %v2736 = vunpack.c.l.b16 %v2500
    %v2737 = vunpack.c.l.b16 %v2501
    %v2738 = vunpack.c.h.b16 %v2501
    %v2739 = vunpack.c.l.b16 %v2502
    %v2740 = vunpack.c.l.b16 %v2503
    %v2741 = vunpack.c.h.b16 %v2503
    %v2742 = vunpack.c.l.b16 %v2504
    %v2743 = vunpack.c.l.b16 %v2505
    %v2744 = vunpack.c.h.b16 %v2505
    %v2745 = vunpack.c.l.b16 %v2506
    %v2746 = vunpack.c.l.b16 %v2507
    %v2747 = vunpack.c.h.b16 %v2507
    %v2748 = vunpack.c.l.b16 %v2508
    %v2749 = vunpack.c.l.b16 %v2509
    %v2750 = vunpack.c.h.b16 %v2509
    %v2751 = vunpack.c.l.b16 %v2510
    %v2752 = vunpack.c.l.b16 %v2511
    %v2753 = vunpack.c.h.b16 %v2511
    %v2754 = vunpack.c.l.b16 %v2512
    %v2755 = vunpack.c.l.b16 %v2513
    %v2756 = vunpack.c.h.b16 %v2513
    %v2757 = vunpack.c.l.b16 %v2514
    %v2758 = vunpack.c.l.b16 %v2515
    %v2759 = vunpack.c.h.b16 %v2515
    %v2760 = vunpack.c.l.b16 %v2516
    %v2761 = vunpack.c.l.b16 %v2517
    %v2762 = vunpack.c.h.b16 %v2517
    %v2763 = vunpack.c.l.b16 %v2518
    %v2764 = vunpack.c.l.b16 %v2519
    %v2765 = vunpack.c.h.b16 %v2519
    %v2766 = vunpack.c.l.b16 %v2520
    %v2767 = vunpack.c.l.b16 %v2521
    %v2768 = vunpack.c.h.b16 %v2521
    %v2769 = vunpack.c.l.b16 %v2522
    %v2770 = vunpack.c.l.b16 %v2523
    %v2771 = vunpack.c.h.b16 %v2523
    %v2772 = vunpack.c.l.b16 %v2524
    %v2773 = vunpack.c.l.b16 %v2525
    %v2774 = vunpack.c.h.b16 %v2525
    %v2775 = vunpack.c.l.b16 %v2526
    %v2776 = vunpack.c.l.b16 %v2527
    %v2777 = vunpack.c.h.b16 %v2527
    %v2778 = vunpack.c.l.b16 %v2528
    %v2779 = vunpack.c.l.b16 %v2529
    %v2780 = vunpack.c.h.b16 %v2529
    %v2781 = vunpack.c.l.b16 %v2530
    %v2782 = vunpack.c.l.b16 %v2531
    %v2783 = vunpack.c.h.b16 %v2531
    %v2784 = vunpack.c.l.b16 %v2532
    %v2785 = vunpack.c.l.b16 %v2533
    %v2786 = vunpack.c.h.b16 %v2533
    %v2787 = vunpack.c.l.b16 %v2534
    %v2788 = vunpack.c.l.b16 %v2535
    %v2789 = vunpack.c.h.b16 %v2535
    %v2790 = vunpack.c.l.b16 %v2536
    %v2791 = vunpack.c.l.b16 %v2537
    %v2792 = vunpack.c.h.b16 %v2537
    %v2793 = vunpack.c.l.b16 %v2538
    %v2794 = vunpack.c.l.b16 %v2539
    %v2795 = vunpack.c.h.b16 %v2539
    %v2796 = vunpack.c.l.b16 %v2540
    %v2797 = vunpack.c.l.b16 %v2541
    %v2798 = vunpack.c.h.b16 %v2541
    %v2799 = vunpack.c.l.b16 %v2542
    %v2800 = vpack.c.b16 %v2659, %v2656
    %v2801 = vpack.c.b16 %v2660, %v2657
    %v2802 = vpack.c.b16 %v2661, %v2658
    %v2803 = vpack.c.b16 %v2665, %v2662
    %v2804 = vpack.c.b16 %v2666, %v2663
    %v2805 = vpack.c.b16 %v2667, %v2664
    %v2806 = vpack.c.b16 %v2671, %v2668
    %v2807 = vpack.c.b16 %v2672, %v2669
    %v2808 = vpack.c.b16 %v2673, %v2670
    %v2809 = vpack.c.b16 %v2677, %v2674
    %v2810 = vpack.c.b16 %v2678, %v2675
    %v2811 = vpack.c.b16 %v2679, %v2676
    %v2812 = vpack.c.b16 %v2683, %v2680
    %v2813 = vpack.c.b16 %v2684, %v2681
    %v2814 = vpack.c.b16 %v2685, %v2682
    %v2815 = vpack.c.b16 %v2689, %v2686
    %v2816 = vpack.c.b16 %v2690, %v2687
    %v2817 = vpack.c.b16 %v2691, %v2688
    %v2818 = vpack.c.b16 %v2695, %v2692
    %v2819 = vpack.c.b16 %v2696, %v2693
    %v2820 = vpack.c.b16 %v2697, %v2694
    %v2821 = vpack.c.b16 %v2701, %v2698
    %v2822 = vpack.c.b16 %v2702, %v2699
    %v2823 = vpack.c.b16 %v2703, %v2700
    %v2824 = vpack.c.b16 %v2707, %v2704
    %v2825 = vpack.c.b16 %v2708, %v2705
    %v2826 = vpack.c.b16 %v2709, %v2706
    %v2827 = vpack.c.b16 %v2713, %v2710
    %v2828 = vpack.c.b16 %v2714, %v2711
    %v2829 = vpack.c.b16 %v2715, %v2712
    %v2830 = vpack.c.b16 %v2719, %v2716
    %v2831 = vpack.c.b16 %v2720, %v2717
    %v2832 = vpack.c.b16 %v2721, %v2718
    %v2833 = vpack.c.b16 %v2725, %v2722
    %v2834 = vpack.c.b16 %v2726, %v2723
    %v2835 = vpack.c.b16 %v2727, %v2724
    %v2836 = vpack.c.b16 %v2731, %v2728
    %v2837 = vpack.c.b16 %v2732, %v2729
    %v2838 = vpack.c.b16 %v2733, %v2730
    %v2839 = vpack.c.b16 %v2737, %v2734
    %v2840 = vpack.c.b16 %v2738, %v2735
    %v2841 = vpack.c.b16 %v2739, %v2736
    %v2842 = vpack.c.b16 %v2743, %v2740
    %v2843 = vpack.c.b16 %v2744, %v2741
    %v2844 = vpack.c.b16 %v2745, %v2742
    %v2845 = vpack.c.b16 %v2749, %v2746
    %v2846 = vpack.c.b16 %v2750, %v2747
    %v2847 = vpack.c.b16 %v2751, %v2748
    %v2848 = vpack.c.b16 %v2755, %v2752
    %v2849 = vpack.c.b16 %v2756, %v2753
    %v2850 = vpack.c.b16 %v2757, %v2754
    %v2851 = vpack.c.b16 %v2761, %v2758
    %v2852 = vpack.c.b16 %v2762, %v2759
    %v2853 = vpack.c.b16 %v2763, %v2760
    %v2854 = vpack.c.b16 %v2767, %v2764
    %v2855 = vpack.c.b16 %v2768, %v2765
    %v2856 = vpack.c.b16 %v2769, %v2766
    %v2857 = vpack.c.b16 %v2773, %v2770
    %v2858 = vpack.c.b16 %v2774, %v2771
    %v2859 = vpack.c.b16 %v2775, %v2772
    %v2860 = vpack.c.b16 %v2779, %v2776
    %v2861 = vpack.c.b16 %v2780, %v2777
    %v2862 = vpack.c.b16 %v2781, %v2778
    %v2863 = vpack.c.b16 %v2785, %v2782
    %v2864 = vpack.c.b16 %v2786, %v2783
    %v2865 = vpack.c.b16 %v2787, %v2784
    %v2866 = vpack.c.b16 %v2791, %v2788
    %v2867 = vpack.c.b16 %v2792, %v2789
    %v2868 = vpack.c.b16 %v2793, %v2790
    %v2869 = vpack.c.b16 %v2797, %v2794
    %v2870 = vpack.c.b16 %v2798, %v2795
    %v2871 = vpack.c.b16 %v2799, %v2796
    %2944 = vmatprep.subr.bf16.mxu0 %v2801
    %2945 = vmatpush1.bf16.msra.mxu0 %v2800
    %2946 = vmatprep.subr.bf16.mxu0 %v2804
    %2947 = vmatpush1.bf16.msra.mxu0 %v2803
    %2948 = vmatprep.subr.bf16.mxu0 %v2807
    %2949 = vmatpush1.bf16.msra.mxu0 %v2806
    %2950 = vmatprep.subr.bf16.mxu0 %v2810
    %2951 = vmatpush1.bf16.msra.mxu0 %v2809
    %2952 = vmatprep.subr.bf16.mxu0 %v2813
    %2953 = vmatpush1.bf16.msra.mxu0 %v2812
    %2954 = vmatprep.subr.bf16.mxu0 %v2816
    %2955 = vmatpush1.bf16.msra.mxu0 %v2815
    %2956 = vmatprep.subr.bf16.mxu0 %v2819
    %2957 = vmatpush1.bf16.msra.mxu0 %v2818
    %2958 = vmatprep.subr.bf16.mxu0 %v2822
    %2959 = vmatpush1.bf16.msra.mxu0 %v2821
    %2960 = vmatprep.subr.bf16.mxu0 %v2825
    %2961 = vmatpush1.bf16.msra.mxu0 %v2824
    %2962 = vmatprep.subr.bf16.mxu0 %v2828
    %2963 = vmatpush1.bf16.msra.mxu0 %v2827
    %2964 = vmatprep.subr.bf16.mxu0 %v2831
    %2965 = vmatpush1.bf16.msra.mxu0 %v2830
    %2966 = vmatprep.subr.bf16.mxu0 %v2834
    %2967 = vmatpush1.bf16.msra.mxu0 %v2833
    %2968 = vmatprep.subr.bf16.mxu0 %v2837
    %2969 = vmatpush1.bf16.msra.mxu0 %v2836
    %2970 = vmatprep.subr.bf16.mxu0 %v2840
    %2971 = vmatpush1.bf16.msra.mxu0 %v2839
    %2972 = vmatprep.subr.bf16.mxu0 %v2843
    %2973 = vmatpush1.bf16.msra.mxu0 %v2842
    %2974 = vmatprep.subr.bf16.mxu0 %v2846
    %2975 = vmatpush1.bf16.msra.mxu0 %v2845
    %2976 = vmatprep.mubr.bf16.mxu0 %v2445
    %2977 = vmatmul.mubr.bf16.gmra.mrb[0].mxu0 %v2444
    %v2978 = vpop.f32.mrb[0].mxu0
    %v2979 = vadd.f32 %v2548, %v2978
    %v2980 = vpop.f32.mrb[0].mxu0
    %v2981 = vadd.f32 %v2552, %v2980
    %v2982 = vpop.f32.mrb[0].mxu0
    %v2983 = vpop.f32.mrb[0].mxu0
    %2984 = vdwg.mxu0
    %2985 = vmatprep.subr.bf16.mxu0 %v2849
    %2986 = vmatpush1.bf16.msra.mxu0 %v2848
    %2987 = vmatprep.subr.bf16.mxu0 %v2852
    %2988 = vmatpush1.bf16.msra.mxu0 %v2851
    %2989 = vmatprep.subr.bf16.mxu0 %v2855
    %2990 = vmatpush1.bf16.msra.mxu0 %v2854
    %2991 = vmatprep.subr.bf16.mxu0 %v2858
    %2992 = vmatpush1.bf16.msra.mxu0 %v2857
    %2993 = vmatprep.subr.bf16.mxu0 %v2861
    %2994 = vmatpush1.bf16.msra.mxu0 %v2860
    %2995 = vmatprep.subr.bf16.mxu0 %v2864
    %2996 = vmatpush1.bf16.msra.mxu0 %v2863
    %2997 = vmatprep.subr.bf16.mxu0 %v2867
    %2998 = vmatpush1.bf16.msra.mxu0 %v2866
    %2999 = vmatprep.subr.bf16.mxu0 %v2870
    %3000 = vmatpush1.bf16.msra.mxu0 %v2869
    %3001 = vmatprep.subr.bf16.mxu0 0
    %3002 = vmatpush1.bf16.msra.mxu0 0
    %3003 = vmatprep.subr.bf16.mxu0 0
    %3004 = vmatpush1.bf16.msra.mxu0 0
    %3005 = vmatprep.subr.bf16.mxu0 0
    %3006 = vmatpush1.bf16.msra.mxu0 0
    %3007 = vmatprep.subr.bf16.mxu0 0
    %3008 = vmatpush1.bf16.msra.mxu0 0
    %3009 = vmatprep.subr.bf16.mxu0 0
    %3010 = vmatpush1.bf16.msra.mxu0 0
    %3011 = vmatprep.subr.bf16.mxu0 0
    %3012 = vmatpush1.bf16.msra.mxu0 0
    %3013 = vmatprep.subr.bf16.mxu0 0
    %3014 = vmatpush1.bf16.msra.mxu0 0
    %3015 = vmatprep.subr.bf16.mxu0 0
    %3016 = vmatpush1.bf16.msra.mxu0 0
    %3017 = vmatprep.mubr.bf16.mxu0 0
    %3018 = vmatmul.mubr.bf16.gmra.mrb[0].mxu0 %v2446
    %v3019 = vpop.f32.mrb[0].mxu0
    %v3020 = vadd.f32 %v2979, %v3019
    %v3021 = vpop.f32.mrb[0].mxu0
    %v3022 = vadd.f32 %v2981, %v3021
    %v3023 = vpop.f32.mrb[0].mxu0
    %v3024 = vpop.f32.mrb[0].mxu0
    %3025 = vdwg.mxu0
    %3026 = vmatprep.subr.bf16.mxu0 0
    %3027 = vmatpush1.bf16.msra.mxu0 %v2802
    %3028 = vmatprep.subr.bf16.mxu0 0
    %3029 = vmatpush1.bf16.msra.mxu0 %v2805
    %3030 = vmatprep.subr.bf16.mxu0 0
    %3031 = vmatpush1.bf16.msra.mxu0 %v2808
    %3032 = vmatprep.subr.bf16.mxu0 0
    %3033 = vmatpush1.bf16.msra.mxu0 %v2811
    %3034 = vmatprep.subr.bf16.mxu0 0
    %3035 = vmatpush1.bf16.msra.mxu0 %v2814
    %3036 = vmatprep.subr.bf16.mxu0 0
    %3037 = vmatpush1.bf16.msra.mxu0 %v2817
    %3038 = vmatprep.subr.bf16.mxu0 0
    %3039 = vmatpush1.bf16.msra.mxu0 %v2820
    %3040 = vmatprep.subr.bf16.mxu0 0
    %3041 = vmatpush1.bf16.msra.mxu0 %v2823
    %3042 = vmatprep.subr.bf16.mxu0 0
    %3043 = vmatpush1.bf16.msra.mxu0 %v2826
    %3044 = vmatprep.subr.bf16.mxu0 0
    %3045 = vmatpush1.bf16.msra.mxu0 %v2829
    %3046 = vmatprep.subr.bf16.mxu0 0
    %3047 = vmatpush1.bf16.msra.mxu0 %v2832
    %3048 = vmatprep.subr.bf16.mxu0 0
    %3049 = vmatpush1.bf16.msra.mxu0 %v2835
    %3050 = vmatprep.subr.bf16.mxu0 0
    %3051 = vmatpush1.bf16.msra.mxu0 %v2838
    %3052 = vmatprep.subr.bf16.mxu0 0
    %3053 = vmatpush1.bf16.msra.mxu0 %v2841
    %3054 = vmatprep.subr.bf16.mxu0 0
    %3055 = vmatpush1.bf16.msra.mxu0 %v2844
    %3056 = vmatprep.subr.bf16.mxu0 0
    %3057 = vmatpush1.bf16.msra.mxu0 %v2847
    %3058 = vmatprep.mubr.bf16.mxu0 %v2445
    %3059 = vmatmul.mubr.bf16.gmra.mrb[0].mxu0 %v2444
    %v3060 = vpop.f32.mrb[0].mxu0
    %v3061 = vadd.f32 %v2556, %v3060
    %v3062 = vpop.f32.mrb[0].mxu0
    %v3063 = vpop.f32.mrb[0].mxu0
    %v3064 = vpop.f32.mrb[0].mxu0
    %3065 = vdwg.mxu0
    %3066 = vmatprep.subr.bf16.mxu0 0
    %3067 = vmatpush1.bf16.msra.mxu0 %v2850
    %3068 = vmatprep.subr.bf16.mxu0 0
    %3069 = vmatpush1.bf16.msra.mxu0 %v2853
    %3070 = vmatprep.subr.bf16.mxu0 0
    %3071 = vmatpush1.bf16.msra.mxu0 %v2856
    %3072 = vmatprep.subr.bf16.mxu0 0
    %3073 = vmatpush1.bf16.msra.mxu0 %v2859
    %3074 = vmatprep.subr.bf16.mxu0 0
    %3075 = vmatpush1.bf16.msra.mxu0 %v2862
    %3076 = vmatprep.subr.bf16.mxu0 0
    %3077 = vmatpush1.bf16.msra.mxu0 %v2865
    %3078 = vmatprep.subr.bf16.mxu0 0
    %3079 = vmatpush1.bf16.msra.mxu0 %v2868
    %3080 = vmatprep.subr.bf16.mxu0 0
    %3081 = vmatpush1.bf16.msra.mxu0 %v2871
    %3082 = vmatprep.subr.bf16.mxu0 0
    %3083 = vmatpush1.bf16.msra.mxu0 0
    %3084 = vmatprep.subr.bf16.mxu0 0
    %3085 = vmatpush1.bf16.msra.mxu0 0
    %3086 = vmatprep.subr.bf16.mxu0 0
    %3087 = vmatpush1.bf16.msra.mxu0 0
    %3088 = vmatprep.subr.bf16.mxu0 0
    %3089 = vmatpush1.bf16.msra.mxu0 0
    %3090 = vmatprep.subr.bf16.mxu0 0
    %3091 = vmatpush1.bf16.msra.mxu0 0
    %3092 = vmatprep.subr.bf16.mxu0 0
    %3093 = vmatpush1.bf16.msra.mxu0 0
    %3094 = vmatprep.subr.bf16.mxu0 0
    %3095 = vmatpush1.bf16.msra.mxu0 0
    %3096 = vmatprep.subr.bf16.mxu0 0
    %3097 = vmatpush1.bf16.msra.mxu0 0
    %3098 = vmatprep.mubr.bf16.mxu0 0
    %3099 = vmatmul.mubr.bf16.gmra.mrb[0].mxu0 %v2446
    %v3100 = vpop.f32.mrb[0].mxu0
    %v3101 = vadd.f32 %v3061, %v3100
    %v3102 = vpop.f32.mrb[0].mxu0
    %v3103 = vpop.f32.mrb[0].mxu0
    %v3104 = vpop.f32.mrb[0].mxu0
    %3105 = vdwg.mxu0
    %v3106 = vmax.f32 %v3020, 0.0
    %v3107 = vmax.f32 %v3022, 0.0
    %v3108 = vmax.f32 %v3101, 0.0
    %v3109 = vpack.c.bf16 %v3106, %v3106
    %v3110 = vpack.c.bf16 %v3107, %v3107
    %v3111 = vpack.c.bf16 %v3108, %v3108
    %v3112 = vld [vmem:[#allocation10] sm:$0xf]
    %v3113 = vld [vmem:[#allocation10 + $0x4] sm:$0xf]
    %v3114 = vld [vmem:[#allocation10 + $0x8] sm:$0xf]
    %v3115 = vld [vmem:[#allocation10 + $0xc] sm:$0xf]
    %v3116 = vld [vmem:[#allocation10 + $0x10] sm:$0xf]
    %v3117 = vld [vmem:[#allocation10 + $0x14] sm:$0xf]
    %v3118 = vld [vmem:[#allocation10 + $0x18] sm:$0xf]
    %v3119 = vld [vmem:[#allocation10 + $0x1c] sm:$0xf]
    %v3120 = vld [vmem:[#allocation10 + $0x20] sm:$0xf]
    %v3121 = vld [vmem:[#allocation10 + $0x24] sm:$0xf]
    %v3122 = vld [vmem:[#allocation10 + $0x28] sm:$0xf]
    %v3123 = vld [vmem:[#allocation10 + $0x2c] sm:$0xf]
    %v3124 = vld [vmem:[#allocation10 + $0x30] sm:$0xf]
    %v3125 = vld [vmem:[#allocation10 + $0x34] sm:$0xf]
    %v3126 = vld [vmem:[#allocation10 + $0x38] sm:$0xf]
    %v3127 = vld [vmem:[#allocation10 + $0x3c] sm:$0xf]
    %v3128 = vld [vmem:[#allocation10 + $0x40] sm:$0xf]
    %v3129 = vld [vmem:[#allocation10 + $0x44] sm:$0xf]
    %v3130 = vld [vmem:[#allocation10 + $0x48] sm:$0xf]
    %v3131 = vld [vmem:[#allocation10 + $0x4c] sm:$0xf]
    %v3132 = vld [vmem:[#allocation10 + $0x50] sm:$0xf]
    %v3133 = vld [vmem:[#allocation10 + $0x54] sm:$0xf]
    %v3134 = vld [vmem:[#allocation10 + $0x58] sm:$0xf]
    %v3135 = vld [vmem:[#allocation10 + $0x5c] sm:$0xf]
    %v3136 = vld [vmem:[#allocation10 + $0x60] sm:$0xf]
    %v3137 = vld [vmem:[#allocation10 + $0x64] sm:$0xf]
    %v3138 = vld [vmem:[#allocation10 + $0x68] sm:$0xf]
    %v3139 = vld [vmem:[#allocation10 + $0x6c] sm:$0xf]
    %v3140 = vld [vmem:[#allocation10 + $0x70] sm:$0xf]
    %v3141 = vld [vmem:[#allocation10 + $0x74] sm:$0xf]
    %v3142 = vld [vmem:[#allocation10 + $0x78] sm:$0xf]
    %v3143 = vld [vmem:[#allocation10 + $0x7c] sm:$0xf]
    %v3144 = vld [vmem:[#allocation10 + $0x80] sm:$0xf]
    %v3145 = vld [vmem:[#allocation10 + $0x84] sm:$0xf]
    %v3146 = vld [vmem:[#allocation10 + $0x88] sm:$0xf]
    %v3147 = vld [vmem:[#allocation10 + $0x8c] sm:$0xf]
    %v3148 = vld [vmem:[#allocation10 + $0x90] sm:$0xf]
    %v3149 = vld [vmem:[#allocation10 + $0x94] sm:$0xf]
    %v3150 = vld [vmem:[#allocation10 + $0x98] sm:$0xf]
    %v3151 = vld [vmem:[#allocation10 + $0x9c] sm:$0xf]
    %v3152 = vld [vmem:[#allocation10 + $0xa0] sm:$0xf]
    %v3153 = vld [vmem:[#allocation10 + $0xa4] sm:$0xf]
    %v3154 = vld [vmem:[#allocation10 + $0xa8] sm:$0xf]
    %v3155 = vld [vmem:[#allocation10 + $0xac] sm:$0xf]
    %v3156 = vld [vmem:[#allocation10 + $0xb0] sm:$0xf]
    %v3157 = vld [vmem:[#allocation10 + $0xb4] sm:$0xf]
    %v3158 = vld [vmem:[#allocation10 + $0xb8] sm:$0xf]
    %v3159 = vld [vmem:[#allocation10 + $0xbc] sm:$0xf]
    %v3208 = vunpack.c.l.b16 %v3112
    %v3209 = vunpack.c.l.b16 %v3113
    %v3210 = vunpack.c.l.b16 %v3114
    %v3211 = vunpack.c.l.b16 %v3115
    %v3212 = vunpack.c.l.b16 %v3116
    %v3213 = vunpack.c.l.b16 %v3117
    %v3214 = vunpack.c.l.b16 %v3118
    %v3215 = vunpack.c.l.b16 %v3119
    %v3216 = vunpack.c.l.b16 %v3120
    %v3217 = vunpack.c.l.b16 %v3121
    %v3218 = vunpack.c.l.b16 %v3122
    %v3219 = vunpack.c.l.b16 %v3123
    %v3220 = vunpack.c.l.b16 %v3124
    %v3221 = vunpack.c.l.b16 %v3125
    %v3222 = vunpack.c.l.b16 %v3126
    %v3223 = vunpack.c.l.b16 %v3127
    %v3224 = vunpack.c.l.b16 %v3128
    %v3225 = vunpack.c.l.b16 %v3129
    %v3226 = vunpack.c.l.b16 %v3130
    %v3227 = vunpack.c.l.b16 %v3131
    %v3228 = vunpack.c.l.b16 %v3132
    %v3229 = vunpack.c.l.b16 %v3133
    %v3230 = vunpack.c.l.b16 %v3134
    %v3231 = vunpack.c.l.b16 %v3135
    %v3232 = vunpack.c.l.b16 %v3136
    %v3233 = vunpack.c.l.b16 %v3137
    %v3234 = vunpack.c.l.b16 %v3138
    %v3235 = vunpack.c.l.b16 %v3139
    %v3236 = vunpack.c.l.b16 %v3140
    %v3237 = vunpack.c.l.b16 %v3141
    %v3238 = vunpack.c.l.b16 %v3142
    %v3239 = vunpack.c.l.b16 %v3143
    %v3240 = vunpack.c.l.b16 %v3144
    %v3241 = vunpack.c.l.b16 %v3145
    %v3242 = vunpack.c.l.b16 %v3146
    %v3243 = vunpack.c.l.b16 %v3147
    %v3244 = vunpack.c.l.b16 %v3148
    %v3245 = vunpack.c.l.b16 %v3149
    %v3246 = vunpack.c.l.b16 %v3150
    %v3247 = vunpack.c.l.b16 %v3151
    %v3248 = vunpack.c.l.b16 %v3152
    %v3249 = vunpack.c.l.b16 %v3153
    %v3250 = vunpack.c.l.b16 %v3154
    %v3251 = vunpack.c.l.b16 %v3155
    %v3252 = vunpack.c.l.b16 %v3156
    %v3253 = vunpack.c.l.b16 %v3157
    %v3254 = vunpack.c.l.b16 %v3158
    %v3255 = vunpack.c.l.b16 %v3159
    %v3256 = vpack.c.b16 %v3209, %v3208
    %v3257 = vpack.c.b16 %v3211, %v3210
    %v3258 = vpack.c.b16 %v3213, %v3212
    %v3259 = vpack.c.b16 %v3215, %v3214
    %v3260 = vpack.c.b16 %v3217, %v3216
    %v3261 = vpack.c.b16 %v3219, %v3218
    %v3262 = vpack.c.b16 %v3221, %v3220
    %v3263 = vpack.c.b16 %v3223, %v3222
    %v3264 = vpack.c.b16 %v3225, %v3224
    %v3265 = vpack.c.b16 %v3227, %v3226
    %v3266 = vpack.c.b16 %v3229, %v3228
    %v3267 = vpack.c.b16 %v3231, %v3230
    %v3268 = vpack.c.b16 %v3233, %v3232
    %v3269 = vpack.c.b16 %v3235, %v3234
    %v3270 = vpack.c.b16 %v3237, %v3236
    %v3271 = vpack.c.b16 %v3239, %v3238
    %v3272 = vpack.c.b16 %v3241, %v3240
    %v3273 = vpack.c.b16 %v3243, %v3242
    %v3274 = vpack.c.b16 %v3245, %v3244
    %v3275 = vpack.c.b16 %v3247, %v3246
    %v3276 = vpack.c.b16 %v3249, %v3248
    %v3277 = vpack.c.b16 %v3251, %v3250
    %v3278 = vpack.c.b16 %v3253, %v3252
    %v3279 = vpack.c.b16 %v3255, %v3254
    %3304 = vmatprep.subr.bf16.mxu0 0
    %3305 = vmatpush1.bf16.msra.mxu0 %v3256
    %3306 = vmatprep.subr.bf16.mxu0 0
    %3307 = vmatpush1.bf16.msra.mxu0 %v3257
    %3308 = vmatprep.subr.bf16.mxu0 0
    %3309 = vmatpush1.bf16.msra.mxu0 %v3258
    %3310 = vmatprep.subr.bf16.mxu0 0
    %3311 = vmatpush1.bf16.msra.mxu0 %v3259
    %3312 = vmatprep.subr.bf16.mxu0 0
    %3313 = vmatpush1.bf16.msra.mxu0 %v3260
    %3314 = vmatprep.subr.bf16.mxu0 0
    %3315 = vmatpush1.bf16.msra.mxu0 %v3261
    %3316 = vmatprep.subr.bf16.mxu0 0
    %3317 = vmatpush1.bf16.msra.mxu0 %v3262
    %3318 = vmatprep.subr.bf16.mxu0 0
    %3319 = vmatpush1.bf16.msra.mxu0 %v3263
    %3320 = vmatprep.subr.bf16.mxu0 0
    %3321 = vmatpush1.bf16.msra.mxu0 %v3264
    %3322 = vmatprep.subr.bf16.mxu0 0
    %3323 = vmatpush1.bf16.msra.mxu0 %v3265
    %3324 = vmatprep.subr.bf16.mxu0 0
    %3325 = vmatpush1.bf16.msra.mxu0 %v3266
    %3326 = vmatprep.subr.bf16.mxu0 0
    %3327 = vmatpush1.bf16.msra.mxu0 %v3267
    %3328 = vmatprep.subr.bf16.mxu0 0
    %3329 = vmatpush1.bf16.msra.mxu0 %v3268
    %3330 = vmatprep.subr.bf16.mxu0 0
    %3331 = vmatpush1.bf16.msra.mxu0 %v3269
    %3332 = vmatprep.subr.bf16.mxu0 0
    %3333 = vmatpush1.bf16.msra.mxu0 %v3270
    %3334 = vmatprep.subr.bf16.mxu0 0
    %3335 = vmatpush1.bf16.msra.mxu0 %v3271
    %3336 = vmatprep.mubr.bf16.mxu0 %v3110
    %3337 = vmatmul.mubr.bf16.gmra.mrb[0].mxu0 %v3109
    %v3338 = vpop.f32.mrb[0].mxu0
    %v3339 = vadd.f32 0.0, %v3338
    %v3340 = vpop.f32.mrb[0].mxu0
    %v3341 = vpop.f32.mrb[0].mxu0
    %v3342 = vpop.f32.mrb[0].mxu0
    %3343 = vdwg.mxu0
    %3344 = vmatprep.subr.bf16.mxu0 0
    %3345 = vmatpush1.bf16.msra.mxu0 %v3272
    %3346 = vmatprep.subr.bf16.mxu0 0
    %3347 = vmatpush1.bf16.msra.mxu0 %v3273
    %3348 = vmatprep.subr.bf16.mxu0 0
    %3349 = vmatpush1.bf16.msra.mxu0 %v3274
    %3350 = vmatprep.subr.bf16.mxu0 0
    %3351 = vmatpush1.bf16.msra.mxu0 %v3275
    %3352 = vmatprep.subr.bf16.mxu0 0
    %3353 = vmatpush1.bf16.msra.mxu0 %v3276
    %3354 = vmatprep.subr.bf16.mxu0 0
    %3355 = vmatpush1.bf16.msra.mxu0 %v3277
    %3356 = vmatprep.subr.bf16.mxu0 0
    %3357 = vmatpush1.bf16.msra.mxu0 %v3278
    %3358 = vmatprep.subr.bf16.mxu0 0
    %3359 = vmatpush1.bf16.msra.mxu0 %v3279
    %3360 = vmatprep.subr.bf16.mxu0 0
    %3361 = vmatpush1.bf16.msra.mxu0 0
    %3362 = vmatprep.subr.bf16.mxu0 0
    %3363 = vmatpush1.bf16.msra.mxu0 0
    %3364 = vmatprep.subr.bf16.mxu0 0
    %3365 = vmatpush1.bf16.msra.mxu0 0
    %3366 = vmatprep.subr.bf16.mxu0 0
    %3367 = vmatpush1.bf16.msra.mxu0 0
    %3368 = vmatprep.subr.bf16.mxu0 0
    %3369 = vmatpush1.bf16.msra.mxu0 0
    %3370 = vmatprep.subr.bf16.mxu0 0
    %3371 = vmatpush1.bf16.msra.mxu0 0
    %3372 = vmatprep.subr.bf16.mxu0 0
    %3373 = vmatpush1.bf16.msra.mxu0 0
    %3374 = vmatprep.subr.bf16.mxu0 0
    %3375 = vmatpush1.bf16.msra.mxu0 0
    %3376 = vmatprep.mubr.bf16.mxu0 0
    %3377 = vmatmul.mubr.bf16.gmra.mrb[0].mxu0 %v3111
    %v3378 = vpop.f32.mrb[0].mxu0
    %v3379 = vadd.f32 %v3339, %v3378
    %v3380 = vpop.f32.mrb[0].mxu0
    %v3381 = vpop.f32.mrb[0].mxu0
    %v3382 = vpop.f32.mrb[0].mxu0
    %3383 = vdwg.mxu0
    %v3384 = vld [vmem:[#allocation2] sm:$0x1]
    %v3386 = vlaneseq
    %v3387 = vshrl.u32 %v3386, 7
    %v3388 = vsub.s32 0, %v3387
    %v3389 = vrot.slane %v3384, %v3388
    %v3391 = vadd.f32 %v3379, %v3389
    %vm3392 = vcmask 1024
    %3393 = vst.msk [vmem:[%s9] sm:$0x3] %vm3392, %v3391
    // Predicated region
    $region58: #{tpu_custom_call.1} parent=1 // pred_check
      _
    $region59: #{tpu_custom_call.1} parent=1 // pred_check_branch
      %3395 = sbr.rel (0) target = $region61
    $region60: #{tpu_custom_call.1} parent=1 // pred_region
      _
    $region61: #{tpu_custom_call.1} parent=1 // pred_fallthru
      _
    // Predicated region
    $region62: #{tpu_custom_call.1} parent=1 // pred_check
      _
    $region63: #{tpu_custom_call.1} parent=1 // pred_check_branch
      %3397 = sbr.rel (0) target = $region65
    $region64: #{tpu_custom_call.1} parent=1 // pred_region
      _
    $region65: #{tpu_custom_call.1} parent=1 // pred_fallthru
      _
    %3398 = vsyncpa [#allocation4], 1
    %3399 = vsyncpa [#allocation6], 1
    %3400 = vsyncpa [#allocation9], 1

</llo_original>
